<compile_context>
chip_gen: v5e
topology: v5e:2x2
jax: 0.10.0
libtpu: 0.0.40
codegen_flags: <defaults>
</compile_context>

<pallas_src>
import functools

import jax
import jax.numpy as jnp
from jax import lax
from jax.experimental import pallas as pl
from jax.experimental.pallas import tpu as pltpu

EPS = 1e-5
LANE = 128


def _round_up(n, m):
    return ((n + m - 1) // m) * m


# ----------------------------- Pallas kernels ------------------------------ #

def _conv_bn_relu_pool_kernel(p_ref, w_ref, b_ref, g_ref, beta_ref, o_ref, *, rows):
    """Fused 3x3 conv (im2col matmul) + BatchNorm(batch stats) + ReLU + 2x2 maxpool.

    p_ref    : (4*rows, K) bf16  -- the 4 pooling-offset patch blocks stacked on rows
    w_ref    : (K, Cp)     bf16  -- conv weight, out-channels zero-padded to Cp (x128)
    b/g/beta : (1, Cp)     f32
    o_ref    : (rows, Cp)  f32   -- pooled output (lane-dense)
    """
    # One MXU matmul for all four pooling offsets (bf16 operands, f32 accumulate).
    y = jnp.dot(p_ref[...], w_ref[...],
                preferred_element_type=jnp.float32) + b_ref[...]

    # BatchNorm over all conv-output positions (the 4 stacked blocks tile them
    # exactly once for even H, W).  Centered two-pass form avoids E[x^2]-E[x]^2
    # cancellation.
    inv_n = 1.0 / float(y.shape[0])
    mean = y.sum(axis=0, keepdims=True) * inv_n
    d = y - mean
    var = (d * d).sum(axis=0, keepdims=True) * inv_n
    scale = g_ref[...] * lax.rsqrt(var + EPS)

    z = jnp.maximum(d * scale + beta_ref[...], 0.0)            # BN + ReLU, f32 VPU

    # 2x2 max-pool == elementwise max of the four offset blocks (static slices).
    r = rows
    o_ref[...] = jnp.maximum(jnp.maximum(z[0:r], z[r:2 * r]),
                             jnp.maximum(z[2 * r:3 * r], z[3 * r:4 * r]))


def _conv_bn_relu_gap_fc_kernel(p_ref, w_ref, b_ref, g_ref, beta_ref,
                                wfc_ref, bfc_ref, o_ref, *, batch, spatial):
    """Fused 3x3 conv + BatchNorm + ReLU + global average pool + Linear.

    p_ref   : (batch*spatial, 9*Cin) bf16    w_ref : (9*Cin, Cout) bf16
    wfc_ref : (Cout, NCp) f32 (classes zero-padded to NCp, x128)
    o_ref   : (batch, NCp) f32
    """
    y = jnp.dot(p_ref[...], w_ref[...],
                preferred_element_type=jnp.float32) + b_ref[...]
    inv_n = 1.0 / float(y.shape[0])
    mean = y.sum(axis=0, keepdims=True) * inv_n
    d = y - mean
    var = (d * d).sum(axis=0, keepdims=True) * inv_n
    scale = g_ref[...] * lax.rsqrt(var + EPS)
    z = jnp.maximum(d * scale + beta_ref[...], 0.0)            # (batch*spatial, Cout)

    # Global average pool: one reshape + mean (no per-batch Python loop).
    feat = jnp.mean(z.reshape(batch, spatial, z.shape[-1]), axis=1)   # (batch, Cout)

    o_ref[...] = jnp.dot(feat, wfc_ref[...],
                         preferred_element_type=jnp.float32) + bfc_ref[...]


# ------------------------------- JAX glue ---------------------------------- #

_COMPILER_PARAMS = pltpu.CompilerParams(vmem_limit_bytes=64 * 1024 * 1024)


def _vmem_specs(n):
    return [pl.BlockSpec(memory_space=pltpu.MemorySpace.VMEM)] * n


def _im2col(x):
    """(N, H, W, C) -> (N, H, W, 9*C) 3x3 'same' patches, (ky, kx, cin) column order."""
    N, H, W, C = x.shape
    xp = jnp.pad(x, ((0, 0), (1, 1), (1, 1), (0, 0)))
    cols = [xp[:, ky:ky + H, kx:kx + W, :] for ky in range(3) for kx in range(3)]
    return jnp.concatenate(cols, axis=-1)


def _pad_cols(a, cp):
    return jnp.pad(a, ((0, 0), (0, cp - a.shape[-1])))


def conv_bn_relu_pool(x, w, b, g, beta):
    """x: (N, H, W, Cin) f32 -> (N, H/2, W/2, Cout) f32."""
    N, H, W, Cin = x.shape
    assert H % 2 == 0 and W % 2 == 0, "MaxPool2d(2) path assumes even H, W"
    Cout = w.shape[-1]
    Cp = _round_up(Cout, LANE)                 # lane-dense output channel count
    Ho, Wo = H // 2, W // 2
    R = N * Ho * Wo
    K = 9 * Cin

    patches = _im2col(x)
    # Stack the four 2x2-pool offset patch matrices along rows -> one MXU matmul.
    mats = [patches[:, dy::2, dx::2, :].reshape(R, K)
            for dy in range(2) for dx in range(2)]
    p = jnp.concatenate(mats, axis=0).astype(jnp.bfloat16)             # (4R, K)
    w2d = _pad_cols(w.reshape(K, Cout), Cp).astype(jnp.bfloat16)       # (K, Cp)

    kern = functools.partial(_conv_bn_relu_pool_kernel, rows=R)
    out = pl.pallas_call(
        kern,
        out_shape=jax.ShapeDtypeStruct((R, Cp), jnp.float32),
        in_specs=_vmem_specs(5),
        out_specs=pl.BlockSpec(memory_space=pltpu.MemorySpace.VMEM),
        compiler_params=_COMPILER_PARAMS,
    )(p, w2d, _pad_cols(b, Cp), _pad_cols(g, Cp), _pad_cols(beta, Cp))
    return out[:, :Cout].reshape(N, Ho, Wo, Cout)


def conv_bn_relu_gap_fc(x, w, b, g, beta, wfc, bfc):
    N, H, W, Cin = x.shape
    Cout = w.shape[-1]
    K = 9 * Cin
    num_classes = wfc.shape[-1]
    NCp = _round_up(num_classes, LANE)

    patches = _im2col(x).reshape(N * H * W, K).astype(jnp.bfloat16)
    w2d = w.reshape(K, Cout).astype(jnp.bfloat16)

    kern = functools.partial(_conv_bn_relu_gap_fc_kernel, batch=N, spatial=H * W)
    out = pl.pallas_call(
        kern,
        out_shape=jax.ShapeDtypeStruct((N, NCp), jnp.float32),
        in_specs=_vmem_specs(7),
        out_specs=pl.BlockSpec(memory_space=pltpu.MemorySpace.VMEM),
        compiler_params=_COMPILER_PARAMS,
    )(patches, w2d, b, g, beta, _pad_cols(wfc, NCp), _pad_cols(bfc, NCp))
    return out[:, :num_classes]


@jax.jit
def audio_cnn_forward(x_nchw, params):
    x = jnp.transpose(x_nchw, (0, 2, 3, 1))            # NCHW -> NHWC
    x = conv_bn_relu_pool(x, params['w1'], params['b1'], params['g1'], params['beta1'])
    x = conv_bn_relu_pool(x, params['w2'], params['b2'], params['g2'], params['beta2'])
    return conv_bn_relu_gap_fc(x, params['w3'], params['b3'], params['g3'],
                               params['beta3'], params['wfc'], params['bfc'])


# ------------------------ deterministic parameter init --------------------- #

def init_params(key, num_classes, in_channels=1):
    ks = jax.random.split(key, 16)

    def w_init(k, shape, fan_in):
        return jax.random.normal(k, shape, jnp.float32) / jnp.sqrt(float(fan_in))

    p = {}
    p['w1'] = w_init(ks[0], (3, 3, in_channels, 16), 9 * in_channels)   # HWIO
    p['b1'] = 0.1 * jax.random.normal(ks[1], (1, 16), jnp.float32)
    p['g1'] = 1.0 + 0.1 * jax.random.normal(ks[2], (1, 16), jnp.float32)
    p['beta1'] = 0.1 * jax.random.normal(ks[3], (1, 16), jnp.float32)

    p['w2'] = w_init(ks[4], (3, 3, 16, 32), 9 * 16)
    p['b2'] = 0.1 * jax.random.normal(ks[5], (1, 32), jnp.float32)
    p['g2'] = 1.0 + 0.1 * jax.random.normal(ks[6], (1, 32), jnp.float32)
    p['beta2'] = 0.1 * jax.random.normal(ks[7], (1, 32), jnp.float32)

    p['w3'] = w_init(ks[8], (3, 3, 32, 64), 9 * 32)
    p['b3'] = 0.1 * jax.random.normal(ks[9], (1, 64), jnp.float32)
    p['g3'] = 1.0 + 0.1 * jax.random.normal(ks[10], (1, 64), jnp.float32)
    p['beta3'] = 0.1 * jax.random.normal(ks[11], (1, 64), jnp.float32)

    p['wfc'] = w_init(ks[12], (64, num_classes), 64)
    p['bfc'] = 0.1 * jax.random.normal(ks[13], (1, num_classes), jnp.float32)
    return p


# --------------------------- pure-JAX reference ----------------------------- #

def _ref_forward(x_nchw, p):
    x = jnp.transpose(x_nchw, (0, 2, 3, 1))

    def block(x, w, b, g, bt):
        y = lax.conv_general_dilated(
            x, w, (1, 1), 'SAME',
            dimension_numbers=('NHWC', 'HWIO', 'NHWC')) + b
        mean = y.mean(axis=(0, 1, 2), keepdims=True)
        var = y.var(axis=(0, 1, 2), keepdims=True)
        y = (y - mean) * lax.rsqrt(var + EPS) * g + bt
        return jnp.maximum(y, 0.0)

    def maxpool2(y):
        return lax.reduce_window(y, -jnp.inf, lax.max,
                                 (1, 2, 2, 1), (1, 2, 2, 1), 'VALID')

    y = maxpool2(block(x, p['w1'], p['b1'], p['g1'], p['beta1']))
    y = maxpool2(block(y, p['w2'], p['b2'], p['g2'], p['beta2']))
    y = block(y, p['w3'], p['b3'], p['g3'], p['beta3'])
    feat = y.mean(axis=(1, 2))
    return feat @ p['wfc'] + p['bfc'].reshape(-1)


# ----------------------------------- main ----------------------------------- #

if __name__ == "__main__":
    num_classes = 10
    key = jax.random.PRNGKey(0)
    kx, kp = jax.random.split(key)
    params = init_params(kp, num_classes, in_channels=1)

    # NCHW input, same convention as the PyTorch module.
    x = jax.random.normal(kx, (2, 1, 16, 16), jnp.float32)

    out = audio_cnn_forward(x, params)
    out = jax.block_until_ready(out)
    assert out.shape == (2, num_classes), out.shape

    ref = jax.block_until_ready(_ref_forward(x, params))
    assert jnp.allclose(out, ref, rtol=5e-2, atol=5e-2), (out, ref)

    print("KERNEL_OK")
</pallas_src>

<mosaic_0001>
module attributes {stable_mosaic.version = 11 : i64} {
  func.func @_conv_bn_relu_pool_kernel(%arg0: memref<512x9xbf16, #tpu.memory_space<vmem>>, %arg1: memref<9x128xbf16, #tpu.memory_space<vmem>>, %arg2: memref<1x128xf32, #tpu.memory_space<vmem>>, %arg3: memref<1x128xf32, #tpu.memory_space<vmem>>, %arg4: memref<1x128xf32, #tpu.memory_space<vmem>>, %arg5: memref<128x128xf32, #tpu.memory_space<vmem>>) attributes {dimension_semantics = [], scalar_prefetch = 0 : i64, scratch_operands = 0 : i64, tpu.core_type = #tpu.core_type<tc>} {
    %c0 = arith.constant 0 : index
    %c0_0 = arith.constant 0 : index
    %0 = vector.load %arg0[%c0, %c0_0] : memref<512x9xbf16, #tpu.memory_space<vmem>>, vector<512x9xbf16>
    %c0_1 = arith.constant 0 : index
    %c0_2 = arith.constant 0 : index
    %1 = vector.load %arg1[%c0_1, %c0_2] : memref<9x128xbf16, #tpu.memory_space<vmem>>, vector<9x128xbf16>
    %cst = arith.constant dense<0.000000e+00> : vector<512x128xf32>
    %2 = tpu.matmul %0, %1, %cst {dimension_numbers = #tpu.dot_dimension_numbers<[1], [0], [0], [1], [0, 0, 1, 1], [], []>} : vector<512x9xbf16>, vector<9x128xbf16>, vector<512x128xf32> -> vector<512x128xf32>
    %c0_3 = arith.constant 0 : index
    %c0_4 = arith.constant 0 : index
    %3 = vector.load %arg2[%c0_3, %c0_4] : memref<1x128xf32, #tpu.memory_space<vmem>>, vector<1x128xf32>
    %4 = vector.broadcast %3 : vector<1x128xf32> to vector<512x128xf32>
    %5 = arith.addf %2, %4 : vector<512x128xf32>
    %cst_5 = arith.constant dense<0.000000e+00> : vector<128xf32>
    %6 = vector.multi_reduction <add>, %5, %cst_5 [0] : vector<512x128xf32> to vector<128xf32>
    %7 = vector.shape_cast %6 : vector<128xf32> to vector<1x128xf32>
    %cst_6 = arith.constant 0.001953125 : f32
    %8 = vector.broadcast %cst_6 : f32 to vector<1x128xf32>
    %9 = arith.mulf %7, %8 : vector<1x128xf32>
    %10 = vector.broadcast %9 : vector<1x128xf32> to vector<512x128xf32>
    %11 = arith.subf %5, %10 : vector<512x128xf32>
    %12 = arith.mulf %11, %11 : vector<512x128xf32>
    %cst_7 = arith.constant dense<0.000000e+00> : vector<128xf32>
    %13 = vector.multi_reduction <add>, %12, %cst_7 [0] : vector<512x128xf32> to vector<128xf32>
    %14 = vector.shape_cast %13 : vector<128xf32> to vector<1x128xf32>
    %cst_8 = arith.constant 0.001953125 : f32
    %15 = vector.broadcast %cst_8 : f32 to vector<1x128xf32>
    %16 = arith.mulf %14, %15 : vector<1x128xf32>
    %c0_9 = arith.constant 0 : index
    %c0_10 = arith.constant 0 : index
    %17 = vector.load %arg3[%c0_9, %c0_10] : memref<1x128xf32, #tpu.memory_space<vmem>>, vector<1x128xf32>
    %cst_11 = arith.constant 9.99999974E-6 : f32
    %18 = vector.broadcast %cst_11 : f32 to vector<1x128xf32>
    %19 = arith.addf %16, %18 : vector<1x128xf32>
    %20 = math.rsqrt %19 : vector<1x128xf32>
    %21 = arith.mulf %17, %20 : vector<1x128xf32>
    %22 = vector.broadcast %21 : vector<1x128xf32> to vector<512x128xf32>
    %23 = arith.mulf %11, %22 : vector<512x128xf32>
    %c0_12 = arith.constant 0 : index
    %c0_13 = arith.constant 0 : index
    %24 = vector.load %arg4[%c0_12, %c0_13] : memref<1x128xf32, #tpu.memory_space<vmem>>, vector<1x128xf32>
    %25 = vector.broadcast %24 : vector<1x128xf32> to vector<512x128xf32>
    %26 = arith.addf %23, %25 : vector<512x128xf32>
    %cst_14 = arith.constant 0.000000e+00 : f32
    %27 = vector.broadcast %cst_14 : f32 to vector<512x128xf32>
    %28 = arith.maximumf %26, %27 : vector<512x128xf32>
    %29 = vector.extract_strided_slice %28 {offsets = [0, 0], sizes = [128, 128], strides = [1, 1]} : vector<512x128xf32> to vector<128x128xf32>
    %30 = vector.extract_strided_slice %28 {offsets = [128, 0], sizes = [128, 128], strides = [1, 1]} : vector<512x128xf32> to vector<128x128xf32>
    %31 = arith.maximumf %29, %30 : vector<128x128xf32>
    %32 = vector.extract_strided_slice %28 {offsets = [256, 0], sizes = [128, 128], strides = [1, 1]} : vector<512x128xf32> to vector<128x128xf32>
    %33 = vector.extract_strided_slice %28 {offsets = [384, 0], sizes = [128, 128], strides = [1, 1]} : vector<512x128xf32> to vector<128x128xf32>
    %34 = arith.maximumf %32, %33 : vector<128x128xf32>
    %35 = arith.maximumf %31, %34 : vector<128x128xf32>
    %c0_15 = arith.constant 0 : index
    %c0_16 = arith.constant 0 : index
    %36 = vector.load %arg5[%c0_15, %c0_16] : memref<128x128xf32, #tpu.memory_space<vmem>>, vector<128x128xf32>
    tpu.vector_store %arg5[%c0_15, %c0_16], %35 {strides = array<i32>} : memref<128x128xf32, #tpu.memory_space<vmem>>, vector<128x128xf32>,
    return
  }
}

module attributes {stable_mosaic.version = 11 : i64} {
  func.func @_conv_bn_relu_pool_kernel(%arg0: memref<128x144xbf16, #tpu.memory_space<vmem>>, %arg1: memref<144x128xbf16, #tpu.memory_space<vmem>>, %arg2: memref<1x128xf32, #tpu.memory_space<vmem>>, %arg3: memref<1x128xf32, #tpu.memory_space<vmem>>, %arg4: memref<1x128xf32, #tpu.memory_space<vmem>>, %arg5: memref<32x128xf32, #tpu.memory_space<vmem>>) attributes {dimension_semantics = [], scalar_prefetch = 0 : i64, scratch_operands = 0 : i64, tpu.core_type = #tpu.core_type<tc>} {
    %c0 = arith.constant 0 : index
    %c0_0 = arith.constant 0 : index
    %0 = vector.load %arg0[%c0, %c0_0] : memref<128x144xbf16, #tpu.memory_space<vmem>>, vector<128x144xbf16>
    %c0_1 = arith.constant 0 : index
    %c0_2 = arith.constant 0 : index
    %1 = vector.load %arg1[%c0_1, %c0_2] : memref<144x128xbf16, #tpu.memory_space<vmem>>, vector<144x128xbf16>
    %cst = arith.constant dense<0.000000e+00> : vector<128x128xf32>
    %2 = tpu.matmul %0, %1, %cst {dimension_numbers = #tpu.dot_dimension_numbers<[1], [0], [0], [1], [0, 0, 1, 1], [], []>} : vector<128x144xbf16>, vector<144x128xbf16>, vector<128x128xf32> -> vector<128x128xf32>
    %c0_3 = arith.constant 0 : index
    %c0_4 = arith.constant 0 : index
    %3 = vector.load %arg2[%c0_3, %c0_4] : memref<1x128xf32, #tpu.memory_space<vmem>>, vector<1x128xf32>
    %4 = vector.broadcast %3 : vector<1x128xf32> to vector<128x128xf32>
    %5 = arith.addf %2, %4 : vector<128x128xf32>
    %cst_5 = arith.constant dense<0.000000e+00> : vector<128xf32>
    %6 = vector.multi_reduction <add>, %5, %cst_5 [0] : vector<128x128xf32> to vector<128xf32>
    %7 = vector.shape_cast %6 : vector<128xf32> to vector<1x128xf32>
    %cst_6 = arith.constant 7.812500e-03 : f32
    %8 = vector.broadcast %cst_6 : f32 to vector<1x128xf32>
    %9 = arith.mulf %7, %8 : vector<1x128xf32>
    %10 = vector.broadcast %9 : vector<1x128xf32> to vector<128x128xf32>
    %11 = arith.subf %5, %10 : vector<128x128xf32>
    %12 = arith.mulf %11, %11 : vector<128x128xf32>
    %cst_7 = arith.constant dense<0.000000e+00> : vector<128xf32>
    %13 = vector.multi_reduction <add>, %12, %cst_7 [0] : vector<128x128xf32> to vector<128xf32>
    %14 = vector.shape_cast %13 : vector<128xf32> to vector<1x128xf32>
    %cst_8 = arith.constant 7.812500e-03 : f32
    %15 = vector.broadcast %cst_8 : f32 to vector<1x128xf32>
    %16 = arith.mulf %14, %15 : vector<1x128xf32>
    %c0_9 = arith.constant 0 : index
    %c0_10 = arith.constant 0 : index
    %17 = vector.load %arg3[%c0_9, %c0_10] : memref<1x128xf32, #tpu.memory_space<vmem>>, vector<1x128xf32>
    %cst_11 = arith.constant 9.99999974E-6 : f32
    %18 = vector.broadcast %cst_11 : f32 to vector<1x128xf32>
    %19 = arith.addf %16, %18 : vector<1x128xf32>
    %20 = math.rsqrt %19 : vector<1x128xf32>
    %21 = arith.mulf %17, %20 : vector<1x128xf32>
    %22 = vector.broadcast %21 : vector<1x128xf32> to vector<128x128xf32>
    %23 = arith.mulf %11, %22 : vector<128x128xf32>
    %c0_12 = arith.constant 0 : index
    %c0_13 = arith.constant 0 : index
    %24 = vector.load %arg4[%c0_12, %c0_13] : memref<1x128xf32, #tpu.memory_space<vmem>>, vector<1x128xf32>
    %25 = vector.broadcast %24 : vector<1x128xf32> to vector<128x128xf32>
    %26 = arith.addf %23, %25 : vector<128x128xf32>
    %cst_14 = arith.constant 0.000000e+00 : f32
    %27 = vector.broadcast %cst_14 : f32 to vector<128x128xf32>
    %28 = arith.maximumf %26, %27 : vector<128x128xf32>
    %29 = vector.extract_strided_slice %28 {offsets = [0, 0], sizes = [32, 128], strides = [1, 1]} : vector<128x128xf32> to vector<32x128xf32>
    %30 = vector.extract_strided_slice %28 {offsets = [32, 0], sizes = [32, 128], strides = [1, 1]} : vector<128x128xf32> to vector<32x128xf32>
    %31 = arith.maximumf %29, %30 : vector<32x128xf32>
    %32 = vector.extract_strided_slice %28 {offsets = [64, 0], sizes = [32, 128], strides = [1, 1]} : vector<128x128xf32> to vector<32x128xf32>
    %33 = vector.extract_strided_slice %28 {offsets = [96, 0], sizes = [32, 128], strides = [1, 1]} : vector<128x128xf32> to vector<32x128xf32>
    %34 = arith.maximumf %32, %33 : vector<32x128xf32>
    %35 = arith.maximumf %31, %34 : vector<32x128xf32>
    %c0_15 = arith.constant 0 : index
    %c0_16 = arith.constant 0 : index
    %36 = vector.load %arg5[%c0_15, %c0_16] : memref<32x128xf32, #tpu.memory_space<vmem>>, vector<32x128xf32>
    tpu.vector_store %arg5[%c0_15, %c0_16], %35 {strides = array<i32>} : memref<32x128xf32, #tpu.memory_space<vmem>>, vector<32x128xf32>,
    return
  }
}

module attributes {stable_mosaic.version = 11 : i64} {
  func.func @_conv_bn_relu_gap_fc_kernel(%arg0: memref<32x288xbf16, #tpu.memory_space<vmem>>, %arg1: memref<288x64xbf16, #tpu.memory_space<vmem>>, %arg2: memref<1x64xf32, #tpu.memory_space<vmem>>, %arg3: memref<1x64xf32, #tpu.memory_space<vmem>>, %arg4: memref<1x64xf32, #tpu.memory_space<vmem>>, %arg5: memref<64x128xf32, #tpu.memory_space<vmem>>, %arg6: memref<1x128xf32, #tpu.memory_space<vmem>>, %arg7: memref<2x128xf32, #tpu.memory_space<vmem>>) attributes {dimension_semantics = [], scalar_prefetch = 0 : i64, scratch_operands = 0 : i64, tpu.core_type = #tpu.core_type<tc>} {
    %c0 = arith.constant 0 : index
    %c0_0 = arith.constant 0 : index
    %0 = vector.load %arg0[%c0, %c0_0] : memref<32x288xbf16, #tpu.memory_space<vmem>>, vector<32x288xbf16>
    %c0_1 = arith.constant 0 : index
    %c0_2 = arith.constant 0 : index
    %1 = vector.load %arg1[%c0_1, %c0_2] : memref<288x64xbf16, #tpu.memory_space<vmem>>, vector<288x64xbf16>
    %cst = arith.constant dense<0.000000e+00> : vector<32x64xf32>
    %2 = tpu.matmul %0, %1, %cst {dimension_numbers = #tpu.dot_dimension_numbers<[1], [0], [0], [1], [0, 0, 1, 1], [], []>} : vector<32x288xbf16>, vector<288x64xbf16>, vector<32x64xf32> -> vector<32x64xf32>
    %c0_3 = arith.constant 0 : index
    %c0_4 = arith.constant 0 : index
    %3 = vector.load %arg2[%c0_3, %c0_4] : memref<1x64xf32, #tpu.memory_space<vmem>>, vector<1x64xf32>
    %4 = vector.broadcast %3 : vector<1x64xf32> to vector<32x64xf32>
    %5 = arith.addf %2, %4 : vector<32x64xf32>
    %cst_5 = arith.constant dense<0.000000e+00> : vector<64xf32>
    %6 = vector.multi_reduction <add>, %5, %cst_5 [0] : vector<32x64xf32> to vector<64xf32>
    %7 = vector.shape_cast %6 : vector<64xf32> to vector<1x64xf32>
    %cst_6 = arith.constant 3.125000e-02 : f32
    %8 = vector.broadcast %cst_6 : f32 to vector<1x64xf32>
    %9 = arith.mulf %7, %8 : vector<1x64xf32>
    %10 = vector.broadcast %9 : vector<1x64xf32> to vector<32x64xf32>
    %11 = arith.subf %5, %10 : vector<32x64xf32>
    %12 = arith.mulf %11, %11 : vector<32x64xf32>
    %cst_7 = arith.constant dense<0.000000e+00> : vector<64xf32>
    %13 = vector.multi_reduction <add>, %12, %cst_7 [0] : vector<32x64xf32> to vector<64xf32>
    %14 = vector.shape_cast %13 : vector<64xf32> to vector<1x64xf32>
    %cst_8 = arith.constant 3.125000e-02 : f32
    %15 = vector.broadcast %cst_8 : f32 to vector<1x64xf32>
    %16 = arith.mulf %14, %15 : vector<1x64xf32>
    %c0_9 = arith.constant 0 : index
    %c0_10 = arith.constant 0 : index
    %17 = vector.load %arg3[%c0_9, %c0_10] : memref<1x64xf32, #tpu.memory_space<vmem>>, vector<1x64xf32>
    %cst_11 = arith.constant 9.99999974E-6 : f32
    %18 = vector.broadcast %cst_11 : f32 to vector<1x64xf32>
    %19 = arith.addf %16, %18 : vector<1x64xf32>
    %20 = math.rsqrt %19 : vector<1x64xf32>
    %21 = arith.mulf %17, %20 : vector<1x64xf32>
    %22 = vector.broadcast %21 : vector<1x64xf32> to vector<32x64xf32>
    %23 = arith.mulf %11, %22 : vector<32x64xf32>
    %c0_12 = arith.constant 0 : index
    %c0_13 = arith.constant 0 : index
    %24 = vector.load %arg4[%c0_12, %c0_13] : memref<1x64xf32, #tpu.memory_space<vmem>>, vector<1x64xf32>
    %25 = vector.broadcast %24 : vector<1x64xf32> to vector<32x64xf32>
    %26 = arith.addf %23, %25 : vector<32x64xf32>
    %cst_14 = arith.constant 0.000000e+00 : f32
    %27 = vector.broadcast %cst_14 : f32 to vector<32x64xf32>
    %28 = arith.maximumf %26, %27 : vector<32x64xf32>
    %29 = vector.shape_cast %28 : vector<32x64xf32> to vector<2x16x64xf32>
    %cst_15 = arith.constant dense<0.000000e+00> : vector<2x64xf32>
    %30 = vector.multi_reduction <add>, %29, %cst_15 [1] : vector<2x16x64xf32> to vector<2x64xf32>
    %cst_16 = arith.constant 1.600000e+01 : f32
    %31 = vector.broadcast %cst_16 : f32 to vector<2x64xf32>
    %32 = arith.divf %30, %31 : vector<2x64xf32>
    %c0_17 = arith.constant 0 : index
    %c0_18 = arith.constant 0 : index
    %33 = vector.load %arg5[%c0_17, %c0_18] : memref<64x128xf32, #tpu.memory_space<vmem>>, vector<64x128xf32>
    %cst_19 = arith.constant dense<0.000000e+00> : vector<2x128xf32>
    %34 = tpu.matmul %32, %33, %cst_19 {dimension_numbers = #tpu.dot_dimension_numbers<[1], [0], [0], [1], [0, 0, 1, 1], [], []>} : vector<2x64xf32>, vector<64x128xf32>, vector<2x128xf32> -> vector<2x128xf32>
    %c0_20 = arith.constant 0 : index
    %c0_21 = arith.constant 0 : index
    %35 = vector.load %arg6[%c0_20, %c0_21] : memref<1x128xf32, #tpu.memory_space<vmem>>, vector<1x128xf32>
    %36 = vector.broadcast %35 : vector<1x128xf32> to vector<2x128xf32>
    %37 = arith.addf %34, %36 : vector<2x128xf32>
    %c0_22 = arith.constant 0 : index
    %c0_23 = arith.constant 0 : index
    %38 = vector.load %arg7[%c0_22, %c0_23] : memref<2x128xf32, #tpu.memory_space<vmem>>, vector<2x128xf32>
    tpu.vector_store %arg7[%c0_22, %c0_23], %37 {strides = array<i32>} : memref<2x128xf32, #tpu.memory_space<vmem>>, vector<2x128xf32>,
    return
  }
}

</mosaic_0001>

<llo_original>
// kernel: audio_cnn_forward.4
$region0: #{audio_cnn_forward.4}
  #allocation0 [shape = 'u32[]', space=smem, size = 0x4, offset = 0x4, fixed_abs, tag = 'smem constant byte address 0x4 - core index']
  #allocation1 [shape = 'u32[72,128]{1,0:T(1,128)}', space=vmem, size = 0x9000, scoped, tag = 'internal scratch']
  %s0 = inlined_call_operand.vmem [shape: bf16[128,144], index: 0, kind: input, shape index: {}]
  %s1 = inlined_call_operand.vmem [shape: bf16[144,128], index: 1, kind: input, shape index: {}]
  %s2 = inlined_call_operand.vmem [shape: f32[1,128], index: 2, kind: input, shape index: {}]
  %s3 = inlined_call_operand.vmem [shape: f32[1,128], index: 3, kind: input, shape index: {}]
  %s4 = inlined_call_operand.vmem [shape: f32[1,128], index: 4, kind: input, shape index: {}]
  %s5 = inlined_call_operand.vmem [shape: f32[32,128], index: 5, kind: output, shape index: {}]
  %s6 = sld [smem:[#allocation0]]
  $region30: #{audio_cnn_forward.4} parent=0
    _
  %s8 = ssub.s32 1, %s6
  %s9 = scalar_select 0, %s8, %s6
  // Predicated region
  $region2: #{audio_cnn_forward.4} parent=0 // pred_check
    _
  $region3: #{audio_cnn_forward.4} parent=0 // pred_check_branch
    %11 = sbr.rel (0) target = $region5
  $region4: #{audio_cnn_forward.4} parent=0 // pred_region
    _
  $region5: #{audio_cnn_forward.4} parent=0 // pred_fallthru
    _
  // Predicated region
  $region6: #{audio_cnn_forward.4} parent=0 // pred_check
    _
  $region7: #{audio_cnn_forward.4} parent=0 // pred_check_branch
    %13 = sbr.rel (0) target = $region9
  $region8: #{audio_cnn_forward.4} parent=0 // pred_region
    _
  $region9: #{audio_cnn_forward.4} parent=0 // pred_fallthru
    _
  // Predicated region
  $region10: #{audio_cnn_forward.4} parent=0 // pred_check
    _
  $region11: #{audio_cnn_forward.4} parent=0 // pred_check_branch
    %15 = sbr.rel (0) target = $region13
  $region12: #{audio_cnn_forward.4} parent=0 // pred_region
    _
  $region13: #{audio_cnn_forward.4} parent=0 // pred_fallthru
    _
  // Predicated region
  $region14: #{audio_cnn_forward.4} parent=0 // pred_check
    _
  $region15: #{audio_cnn_forward.4} parent=0 // pred_check_branch
    %17 = sbr.rel (0) target = $region17
  $region16: #{audio_cnn_forward.4} parent=0 // pred_region
    _
  $region17: #{audio_cnn_forward.4} parent=0 // pred_fallthru
    _
  // Predicated region
  $region18: #{audio_cnn_forward.4} parent=0 // pred_check
    _
  $region19: #{audio_cnn_forward.4} parent=0 // pred_check_branch
    %19 = sbr.rel (0) target = $region21
  $region20: #{audio_cnn_forward.4} parent=0 // pred_region
    _
  $region21: #{audio_cnn_forward.4} parent=0 // pred_fallthru
    _
  %v21 = vld [vmem:[%s0] sm:$0xff]
  %v22 = vld [vmem:[%s0 + $0x8] sm:$0xff]
  %v23 = vld [vmem:[%s0 + $0x10] sm:$0xff]
  %v24 = vld [vmem:[%s0 + $0x18] sm:$0xff]
  %v25 = vld [vmem:[%s0 + $0x20] sm:$0xff]
  %v26 = vld [vmem:[%s0 + $0x28] sm:$0xff]
  %v27 = vld [vmem:[%s0 + $0x30] sm:$0xff]
  %v28 = vld [vmem:[%s0 + $0x38] sm:$0xff]
  %v29 = vld [vmem:[%s0 + $0x40] sm:$0xff]
  %v30 = vld [vmem:[%s0 + $0x48] sm:$0xff]
  %v31 = vld [vmem:[%s0 + $0x50] sm:$0xff]
  %v32 = vld [vmem:[%s0 + $0x58] sm:$0xff]
  %v33 = vld [vmem:[%s0 + $0x60] sm:$0xff]
  %v34 = vld [vmem:[%s0 + $0x68] sm:$0xff]
  %v35 = vld [vmem:[%s0 + $0x70] sm:$0xff]
  %v36 = vld [vmem:[%s0 + $0x78] sm:$0xff]
  %v37 = vld [vmem:[%s1] sm:$0xf]
  %v38 = vld [vmem:[%s1 + $0x4] sm:$0xf]
  %v39 = vld [vmem:[%s1 + $0x8] sm:$0xf]
  %v40 = vld [vmem:[%s1 + $0xc] sm:$0xf]
  %v41 = vld [vmem:[%s1 + $0x10] sm:$0xf]
  %v42 = vld [vmem:[%s1 + $0x14] sm:$0xf]
  %v43 = vld [vmem:[%s1 + $0x18] sm:$0xf]
  %v44 = vld [vmem:[%s1 + $0x1c] sm:$0xf]
  %v45 = vld [vmem:[%s1 + $0x20] sm:$0xf]
  %v46 = vld [vmem:[%s1 + $0x24] sm:$0xf]
  %v47 = vld [vmem:[%s1 + $0x28] sm:$0xf]
  %v48 = vld [vmem:[%s1 + $0x2c] sm:$0xf]
  %v49 = vld [vmem:[%s1 + $0x30] sm:$0xf]
  %v50 = vld [vmem:[%s1 + $0x34] sm:$0xf]
  %v51 = vld [vmem:[%s1 + $0x38] sm:$0xf]
  %v52 = vld [vmem:[%s1 + $0x3c] sm:$0xf]
  %v53 = vld [vmem:[%s1 + $0x40] sm:$0xf]
  %v54 = vld [vmem:[%s1 + $0x44] sm:$0xf]
  %v55 = vld [vmem:[%s2] sm:$0x1]
  %v57 = vperm.slane %v55, 0
  %v75 = vunpack.c.l.b16 %v21
  %v76 = vunpack.c.h.b16 %v21
  %v77 = vunpack.c.l.b16 %v22
  %v78 = vunpack.c.h.b16 %v22
  %v79 = vunpack.c.l.b16 %v23
  %v80 = vunpack.c.h.b16 %v23
  %v81 = vunpack.c.l.b16 %v24
  %v82 = vunpack.c.h.b16 %v24
  %v83 = vunpack.c.l.b16 %v25
  %v84 = vunpack.c.h.b16 %v25
  %v85 = vunpack.c.l.b16 %v26
  %v86 = vunpack.c.h.b16 %v26
  %v87 = vunpack.c.l.b16 %v27
  %v88 = vunpack.c.h.b16 %v27
  %v89 = vunpack.c.l.b16 %v28
  %v90 = vunpack.c.h.b16 %v28
  %v91 = vunpack.c.l.b16 %v29
  %v92 = vunpack.c.h.b16 %v29
  %v93 = vunpack.c.l.b16 %v30
  %v94 = vunpack.c.h.b16 %v30
  %v95 = vunpack.c.l.b16 %v31
  %v96 = vunpack.c.h.b16 %v31
  %v97 = vunpack.c.l.b16 %v32
  %v98 = vunpack.c.h.b16 %v32
  %v99 = vunpack.c.l.b16 %v33
  %v100 = vunpack.c.h.b16 %v33
  %v101 = vunpack.c.l.b16 %v34
  %v102 = vunpack.c.h.b16 %v34
  %v103 = vunpack.c.l.b16 %v35
  %v104 = vunpack.c.h.b16 %v35
  %v105 = vunpack.c.l.b16 %v36
  %v106 = vunpack.c.h.b16 %v36
  %v107 = vpack.c.b16 %v77, %v75
  %v108 = vpack.c.b16 %v78, %v76
  %v109 = vpack.c.b16 %v81, %v79
  %v110 = vpack.c.b16 %v82, %v80
  %v111 = vpack.c.b16 %v85, %v83
  %v112 = vpack.c.b16 %v86, %v84
  %v113 = vpack.c.b16 %v89, %v87
  %v114 = vpack.c.b16 %v90, %v88
  %v115 = vpack.c.b16 %v93, %v91
  %v116 = vpack.c.b16 %v94, %v92
  %v117 = vpack.c.b16 %v97, %v95
  %v118 = vpack.c.b16 %v98, %v96
  %v119 = vpack.c.b16 %v101, %v99
  %v120 = vpack.c.b16 %v102, %v100
  %v121 = vpack.c.b16 %v105, %v103
  %v122 = vpack.c.b16 %v106, %v104
  %v149 = vunpack.c.l.b16 %v37
  %v150 = vunpack.c.l.b16 %v38
  %v151 = vunpack.c.l.b16 %v39
  %v152 = vunpack.c.l.b16 %v40
  %v153 = vunpack.c.l.b16 %v41
  %v154 = vunpack.c.l.b16 %v42
  %v155 = vunpack.c.l.b16 %v43
  %v156 = vunpack.c.l.b16 %v44
  %v157 = vunpack.c.l.b16 %v45
  %v158 = vunpack.c.l.b16 %v46
  %v159 = vunpack.c.l.b16 %v47
  %v160 = vunpack.c.l.b16 %v48
  %v161 = vunpack.c.l.b16 %v49
  %v162 = vunpack.c.l.b16 %v50
  %v163 = vunpack.c.l.b16 %v51
  %v164 = vunpack.c.l.b16 %v52
  %v165 = vunpack.c.l.b16 %v53
  %v166 = vunpack.c.l.b16 %v54
  %v167 = vpack.c.b16 %v150, %v149
  %v168 = vpack.c.b16 %v152, %v151
  %v169 = vpack.c.b16 %v154, %v153
  %v170 = vpack.c.b16 %v156, %v155
  %v171 = vpack.c.b16 %v158, %v157
  %v172 = vpack.c.b16 %v160, %v159
  %v173 = vpack.c.b16 %v162, %v161
  %v174 = vpack.c.b16 %v164, %v163
  %v175 = vpack.c.b16 %v166, %v165
  %vm185 = vcmask 130048
  %v187 = vsel %vm185, %v108, 0
  %v190 = vsel %vm185, %v110, 0
  %v193 = vsel %vm185, %v112, 0
  %v196 = vsel %vm185, %v114, 0
  %v199 = vsel %vm185, %v116, 0
  %v202 = vsel %vm185, %v118, 0
  %v205 = vsel %vm185, %v120, 0
  %v208 = vsel %vm185, %v122, 0
  %210 = vmatpush.bf16.msra.mxu0 %v174
  %211 = vmatpush.bf16.msra.mxu0 %v173
  %212 = vmatpush.bf16.msra.mxu0 %v172
  %213 = vmatpush.bf16.msra.mxu0 %v171
  %214 = vmatpush.bf16.msra.mxu0 %v170
  %215 = vmatpush.bf16.msra.mxu0 %v169
  %216 = vmatpush.bf16.msra.mxu0 %v168
  %217 = vmatpush.bf16.msra.mxu0 %v167
  %218 = vmatmul.bf16.gmra.mxu0 %v107
  %v219 = vpop.f32.mrf.mxu0
  %v220 = vadd.f32 %v57, %v219
  %v221 = vpop.f32.mrf.mxu0
  %v222 = vadd.f32 %v57, %v221
  %223 = vmatmul.bf16.gmra.mxu0 %v109
  %v224 = vpop.f32.mrf.mxu0
  %v225 = vadd.f32 %v57, %v224
  %v226 = vpop.f32.mrf.mxu0
  %v227 = vadd.f32 %v57, %v226
  %228 = vmatmul.bf16.gmra.mxu0 %v111
  %v229 = vpop.f32.mrf.mxu0
  %v230 = vadd.f32 %v57, %v229
  %v231 = vpop.f32.mrf.mxu0
  %v232 = vadd.f32 %v57, %v231
  %233 = vmatmul.bf16.gmra.mxu0 %v113
  %v234 = vpop.f32.mrf.mxu0
  %v235 = vadd.f32 %v57, %v234
  %v236 = vpop.f32.mrf.mxu0
  %v237 = vadd.f32 %v57, %v236
  %238 = vmatmul.bf16.gmra.mxu0 %v115
  %v239 = vpop.f32.mrf.mxu0
  %v240 = vadd.f32 %v57, %v239
  %v241 = vpop.f32.mrf.mxu0
  %v242 = vadd.f32 %v57, %v241
  %243 = vmatmul.bf16.gmra.mxu0 %v117
  %v244 = vpop.f32.mrf.mxu0
  %v245 = vadd.f32 %v57, %v244
  %v246 = vpop.f32.mrf.mxu0
  %v247 = vadd.f32 %v57, %v246
  %248 = vmatmul.bf16.gmra.mxu0 %v119
  %v249 = vpop.f32.mrf.mxu0
  %v250 = vadd.f32 %v57, %v249
  %v251 = vpop.f32.mrf.mxu0
  %v252 = vadd.f32 %v57, %v251
  %253 = vmatmul.bf16.gmra.mxu0 %v121
  %v254 = vpop.f32.mrf.mxu0
  %v255 = vadd.f32 %v57, %v254
  %v256 = vpop.f32.mrf.mxu0
  %v257 = vadd.f32 %v57, %v256
  %258 = vdwg.mxu0
  %259 = vmatpush.bf16.msra.mxu0 0
  %260 = vmatpush.bf16.msra.mxu0 0
  %261 = vmatpush.bf16.msra.mxu0 0
  %262 = vmatpush.bf16.msra.mxu0 0
  %263 = vmatpush.bf16.msra.mxu0 0
  %264 = vmatpush.bf16.msra.mxu0 0
  %265 = vmatpush.bf16.msra.mxu0 0
  %266 = vmatpush.bf16.msra.mxu0 %v175
  %267 = vmatmul.bf16.gmra.mxu0 %v187
  %v268 = vpop.f32.mrf.mxu0
  %v269 = vadd.f32 %v220, %v268
  %v270 = vpop.f32.mrf.mxu0
  %v271 = vadd.f32 %v222, %v270
  %272 = vmatmul.bf16.gmra.mxu0 %v190
  %v273 = vpop.f32.mrf.mxu0
  %v274 = vadd.f32 %v225, %v273
  %v275 = vpop.f32.mrf.mxu0
  %v276 = vadd.f32 %v227, %v275
  %277 = vmatmul.bf16.gmra.mxu0 %v193
  %v278 = vpop.f32.mrf.mxu0
  %v279 = vadd.f32 %v230, %v278
  %v280 = vpop.f32.mrf.mxu0
  %v281 = vadd.f32 %v232, %v280
  %282 = vmatmul.bf16.gmra.mxu0 %v196
  %v283 = vpop.f32.mrf.mxu0
  %v284 = vadd.f32 %v235, %v283
  %v285 = vpop.f32.mrf.mxu0
  %v286 = vadd.f32 %v237, %v285
  %287 = vmatmul.bf16.gmra.mxu0 %v199
  %v288 = vpop.f32.mrf.mxu0
  %v289 = vadd.f32 %v240, %v288
  %v290 = vpop.f32.mrf.mxu0
  %v291 = vadd.f32 %v242, %v290
  %292 = vmatmul.bf16.gmra.mxu0 %v202
  %v293 = vpop.f32.mrf.mxu0
  %v294 = vadd.f32 %v245, %v293
  %v295 = vpop.f32.mrf.mxu0
  %v296 = vadd.f32 %v247, %v295
  %297 = vmatmul.bf16.gmra.mxu0 %v205
  %v298 = vpop.f32.mrf.mxu0
  %v299 = vadd.f32 %v250, %v298
  %v300 = vpop.f32.mrf.mxu0
  %v301 = vadd.f32 %v252, %v300
  %302 = vmatmul.bf16.gmra.mxu0 %v208
  %v303 = vpop.f32.mrf.mxu0
  %v304 = vadd.f32 %v255, %v303
  %v305 = vpop.f32.mrf.mxu0
  %v306 = vadd.f32 %v257, %v305
  %307 = vdwg.mxu0
  %v308 = vadd.f32 %v269, %v271
  %v309 = vadd.f32 %v308, %v274
  %v310 = vadd.f32 %v309, %v276
  %v311 = vadd.f32 %v310, %v279
  %v312 = vadd.f32 %v311, %v281
  %v313 = vadd.f32 %v312, %v284
  %v314 = vadd.f32 %v313, %v286
  %v315 = vadd.f32 %v314, %v289
  %v316 = vadd.f32 %v315, %v291
  %v317 = vadd.f32 %v316, %v294
  %v318 = vadd.f32 %v317, %v296
  %v319 = vadd.f32 %v318, %v299
  %v320 = vadd.f32 %v319, %v301
  %v321 = vadd.f32 %v320, %v304
  %v322 = vadd.f32 %v321, %v306
  %v323 = vrot.slane %v322, 4
  %v324 = vadd.f32 %v322, %v323
  %v325 = vrot.slane %v324, 2
  %v326 = vadd.f32 %v324, %v325
  %v327 = vrot.slane %v326, 1
  %v328 = vadd.f32 %v326, %v327
  %v329 = vmul.f32 %v328, 0.0078125
  %v330 = vsub.f32 %v269, %v329
  %v331 = vsub.f32 %v271, %v329
  %v332 = vsub.f32 %v274, %v329
  %v333 = vsub.f32 %v276, %v329
  %v334 = vsub.f32 %v279, %v329
  %v335 = vsub.f32 %v281, %v329
  %v336 = vsub.f32 %v284, %v329
  %v337 = vsub.f32 %v286, %v329
  %v338 = vsub.f32 %v289, %v329
  %v339 = vsub.f32 %v291, %v329
  %v340 = vsub.f32 %v294, %v329
  %v341 = vsub.f32 %v296, %v329
  %v342 = vsub.f32 %v299, %v329
  %v343 = vsub.f32 %v301, %v329
  %v344 = vsub.f32 %v304, %v329
  %v345 = vsub.f32 %v306, %v329
  %v346 = vmul.f32 %v330, %v330
  %v347 = vmul.f32 %v331, %v331
  %v348 = vmul.f32 %v332, %v332
  %v349 = vmul.f32 %v333, %v333
  %v350 = vmul.f32 %v334, %v334
  %v351 = vmul.f32 %v335, %v335
  %v352 = vmul.f32 %v336, %v336
  %v353 = vmul.f32 %v337, %v337
  %v354 = vmul.f32 %v338, %v338
  %v355 = vmul.f32 %v339, %v339
  %v356 = vmul.f32 %v340, %v340
  %v357 = vmul.f32 %v341, %v341
  %v358 = vmul.f32 %v342, %v342
  %v359 = vmul.f32 %v343, %v343
  %v360 = vmul.f32 %v344, %v344
  %v361 = vmul.f32 %v345, %v345
  %v362 = vadd.f32 %v346, %v347
  %v363 = vadd.f32 %v362, %v348
  %v364 = vadd.f32 %v363, %v349
  %v365 = vadd.f32 %v364, %v350
  %v366 = vadd.f32 %v365, %v351
  %v367 = vadd.f32 %v366, %v352
  %v368 = vadd.f32 %v367, %v353
  %v369 = vadd.f32 %v368, %v354
  %v370 = vadd.f32 %v369, %v355
  %v371 = vadd.f32 %v370, %v356
  %v372 = vadd.f32 %v371, %v357
  %v373 = vadd.f32 %v372, %v358
  %v374 = vadd.f32 %v373, %v359
  %v375 = vadd.f32 %v374, %v360
  %v376 = vadd.f32 %v375, %v361
  %v377 = vrot.slane %v376, 4
  %v378 = vadd.f32 %v376, %v377
  %v379 = vrot.slane %v378, 2
  %v380 = vadd.f32 %v378, %v379
  %v381 = vrot.slane %v380, 1
  %v382 = vadd.f32 %v380, %v381
  %v383 = vmul.f32 %v382, 0.0078125
  %v384 = vld [vmem:[%s3] sm:$0x1]
  %v385 = vadd.f32 %v383, 1e-05
  %v386 = vrsqrt.pop %v385
  %v387 = vmul.f32 %v386, %v385
  %v388 = vmul.f32 %v387, %v386
  %v389 = vmul.f32 0.5, %v388
  %v390 = vsub.f32 1.5, %v389
  %v391 = vmul.f32 %v386, %v390
  %vm392 = vweird.f32 %v385
  %vm393 = vweird.f32 %v386
  %vm394 = vmor %vm392, %vm393
  %v395 = vsel %vm394, %v386, %v391
  %v396 = vmul.f32 %v384, %v395
  %v398 = vperm.slane %v396, 0
  %v400 = vmul.f32 %v330, %v398
  %v401 = vmul.f32 %v331, %v398
  %v402 = vmul.f32 %v332, %v398
  %v403 = vmul.f32 %v333, %v398
  %v404 = vmul.f32 %v334, %v398
  %v405 = vmul.f32 %v335, %v398
  %v406 = vmul.f32 %v336, %v398
  %v407 = vmul.f32 %v337, %v398
  %v408 = vmul.f32 %v338, %v398
  %v409 = vmul.f32 %v339, %v398
  %v410 = vmul.f32 %v340, %v398
  %v411 = vmul.f32 %v341, %v398
  %v412 = vmul.f32 %v342, %v398
  %v413 = vmul.f32 %v343, %v398
  %v414 = vmul.f32 %v344, %v398
  %v415 = vmul.f32 %v345, %v398
  %v416 = vld [vmem:[%s4] sm:$0x1]
  %v418 = vperm.slane %v416, 0
  %v420 = vadd.f32 %v400, %v418
  %v421 = vadd.f32 %v401, %v418
  %v422 = vadd.f32 %v402, %v418
  %v423 = vadd.f32 %v403, %v418
  %v424 = vadd.f32 %v404, %v418
  %v425 = vadd.f32 %v405, %v418
  %v426 = vadd.f32 %v406, %v418
  %v427 = vadd.f32 %v407, %v418
  %v428 = vadd.f32 %v408, %v418
  %v429 = vadd.f32 %v409, %v418
  %v430 = vadd.f32 %v410, %v418
  %v431 = vadd.f32 %v411, %v418
  %v432 = vadd.f32 %v412, %v418
  %v433 = vadd.f32 %v413, %v418
  %v434 = vadd.f32 %v414, %v418
  %v435 = vadd.f32 %v415, %v418
  %v436 = vmax.f32 %v420, 0.0
  %v437 = vmax.f32 %v421, 0.0
  %v438 = vmax.f32 %v422, 0.0
  %v439 = vmax.f32 %v423, 0.0
  %v440 = vmax.f32 %v424, 0.0
  %v441 = vmax.f32 %v425, 0.0
  %v442 = vmax.f32 %v426, 0.0
  %v443 = vmax.f32 %v427, 0.0
  %v444 = vmax.f32 %v428, 0.0
  %v445 = vmax.f32 %v429, 0.0
  %v446 = vmax.f32 %v430, 0.0
  %v447 = vmax.f32 %v431, 0.0
  %v448 = vmax.f32 %v432, 0.0
  %v449 = vmax.f32 %v433, 0.0
  %v450 = vmax.f32 %v434, 0.0
  %v451 = vmax.f32 %v435, 0.0
  %v452 = vmax.f32 %v436, %v440
  %v453 = vmax.f32 %v437, %v441
  %v454 = vmax.f32 %v438, %v442
  %v455 = vmax.f32 %v439, %v443
  %v456 = vmax.f32 %v444, %v448
  %v457 = vmax.f32 %v445, %v449
  %v458 = vmax.f32 %v446, %v450
  %v459 = vmax.f32 %v447, %v451
  %v460 = vmax.f32 %v452, %v456
  %v461 = vmax.f32 %v453, %v457
  %v462 = vmax.f32 %v454, %v458
  %v463 = vmax.f32 %v455, %v459
  %464 = vst [vmem:[%s5] sm:$0xff] %v460
  %465 = vst [vmem:[%s5 + $0x8] sm:$0xff] %v461
  %466 = vst [vmem:[%s5 + $0x10] sm:$0xff] %v462
  %467 = vst [vmem:[%s5 + $0x18] sm:$0xff] %v463
  // Predicated region
  $region22: #{audio_cnn_forward.4} parent=0 // pred_check
    _
  $region23: #{audio_cnn_forward.4} parent=0 // pred_check_branch
    %469 = sbr.rel (0) target = $region25
  $region24: #{audio_cnn_forward.4} parent=0 // pred_region
    _
  $region25: #{audio_cnn_forward.4} parent=0 // pred_fallthru
    _
  // Predicated region
  $region26: #{audio_cnn_forward.4} parent=0 // pred_check
    _
  $region27: #{audio_cnn_forward.4} parent=0 // pred_check_branch
    %471 = sbr.rel (0) target = $region29
  $region28: #{audio_cnn_forward.4} parent=0 // pred_region
    _
  $region29: #{audio_cnn_forward.4} parent=0 // pred_fallthru
    _

// kernel: audio_cnn_forward.3
$region0: #{audio_cnn_forward.3}
  #allocation0 [shape = 'u32[]', space=smem, size = 0x4, offset = 0x4, fixed_abs, tag = 'smem constant byte address 0x4 - core index']
  #allocation1 [shape = 'u32[72,128]{1,0:T(1,128)}', space=vmem, size = 0x9000, scoped, tag = 'internal scratch']
  %s0 = inlined_call_operand.vmem [shape: bf16[512,9], index: 0, kind: input, shape index: {}]
  %s1 = inlined_call_operand.vmem [shape: bf16[9,128], index: 1, kind: input, shape index: {}]
  %s2 = inlined_call_operand.vmem [shape: f32[1,128], index: 2, kind: input, shape index: {}]
  %s3 = inlined_call_operand.vmem [shape: f32[1,128], index: 3, kind: input, shape index: {}]
  %s4 = inlined_call_operand.vmem [shape: f32[1,128], index: 4, kind: input, shape index: {}]
  %s5 = inlined_call_operand.vmem [shape: f32[128,128], index: 5, kind: output, shape index: {}]
  %s6 = sld [smem:[#allocation0]]
  $region30: #{audio_cnn_forward.3} parent=0
    _
  %s8 = ssub.s32 1, %s6
  %s9 = scalar_select 0, %s8, %s6
  // Predicated region
  $region2: #{audio_cnn_forward.3} parent=0 // pred_check
    _
  $region3: #{audio_cnn_forward.3} parent=0 // pred_check_branch
    %11 = sbr.rel (0) target = $region5
  $region4: #{audio_cnn_forward.3} parent=0 // pred_region
    _
  $region5: #{audio_cnn_forward.3} parent=0 // pred_fallthru
    _
  // Predicated region
  $region6: #{audio_cnn_forward.3} parent=0 // pred_check
    _
  $region7: #{audio_cnn_forward.3} parent=0 // pred_check_branch
    %13 = sbr.rel (0) target = $region9
  $region8: #{audio_cnn_forward.3} parent=0 // pred_region
    _
  $region9: #{audio_cnn_forward.3} parent=0 // pred_fallthru
    _
  // Predicated region
  $region10: #{audio_cnn_forward.3} parent=0 // pred_check
    _
  $region11: #{audio_cnn_forward.3} parent=0 // pred_check_branch
    %15 = sbr.rel (0) target = $region13
  $region12: #{audio_cnn_forward.3} parent=0 // pred_region
    _
  $region13: #{audio_cnn_forward.3} parent=0 // pred_fallthru
    _
  // Predicated region
  $region14: #{audio_cnn_forward.3} parent=0 // pred_check
    _
  $region15: #{audio_cnn_forward.3} parent=0 // pred_check_branch
    %17 = sbr.rel (0) target = $region17
  $region16: #{audio_cnn_forward.3} parent=0 // pred_region
    _
  $region17: #{audio_cnn_forward.3} parent=0 // pred_fallthru
    _
  // Predicated region
  $region18: #{audio_cnn_forward.3} parent=0 // pred_check
    _
  $region19: #{audio_cnn_forward.3} parent=0 // pred_check_branch
    %19 = sbr.rel (0) target = $region21
  $region20: #{audio_cnn_forward.3} parent=0 // pred_region
    _
  $region21: #{audio_cnn_forward.3} parent=0 // pred_fallthru
    _
  %v21 = vld [vmem:[%s0] sm:$0xf]
  %v22 = vld [vmem:[%s0 + $0x4] sm:$0xf]
  %v23 = vld [vmem:[%s0 + $0x8] sm:$0xf]
  %v24 = vld [vmem:[%s0 + $0xc] sm:$0xf]
  %v25 = vld [vmem:[%s0 + $0x10] sm:$0xf]
  %v26 = vld [vmem:[%s0 + $0x14] sm:$0xf]
  %v27 = vld [vmem:[%s0 + $0x18] sm:$0xf]
  %v28 = vld [vmem:[%s0 + $0x1c] sm:$0xf]
  %v29 = vld [vmem:[%s0 + $0x20] sm:$0xf]
  %v30 = vld [vmem:[%s0 + $0x24] sm:$0xf]
  %v31 = vld [vmem:[%s0 + $0x28] sm:$0xf]
  %v32 = vld [vmem:[%s0 + $0x2c] sm:$0xf]
  %v33 = vld [vmem:[%s0 + $0x30] sm:$0xf]
  %v34 = vld [vmem:[%s0 + $0x34] sm:$0xf]
  %v35 = vld [vmem:[%s0 + $0x38] sm:$0xf]
  %v36 = vld [vmem:[%s0 + $0x3c] sm:$0xf]
  %v37 = vld [vmem:[%s0 + $0x40] sm:$0xf]
  %v38 = vld [vmem:[%s0 + $0x44] sm:$0xf]
  %v39 = vld [vmem:[%s0 + $0x48] sm:$0xf]
  %v40 = vld [vmem:[%s0 + $0x4c] sm:$0xf]
  %v41 = vld [vmem:[%s0 + $0x50] sm:$0xf]
  %v42 = vld [vmem:[%s0 + $0x54] sm:$0xf]
  %v43 = vld [vmem:[%s0 + $0x58] sm:$0xf]
  %v44 = vld [vmem:[%s0 + $0x5c] sm:$0xf]
  %v45 = vld [vmem:[%s0 + $0x60] sm:$0xf]
  %v46 = vld [vmem:[%s0 + $0x64] sm:$0xf]
  %v47 = vld [vmem:[%s0 + $0x68] sm:$0xf]
  %v48 = vld [vmem:[%s0 + $0x6c] sm:$0xf]
  %v49 = vld [vmem:[%s0 + $0x70] sm:$0xf]
  %v50 = vld [vmem:[%s0 + $0x74] sm:$0xf]
  %v51 = vld [vmem:[%s0 + $0x78] sm:$0xf]
  %v52 = vld [vmem:[%s0 + $0x7c] sm:$0xf]
  %v53 = vld [vmem:[%s0 + $0x80] sm:$0xf]
  %v54 = vld [vmem:[%s0 + $0x84] sm:$0xf]
  %v55 = vld [vmem:[%s0 + $0x88] sm:$0xf]
  %v56 = vld [vmem:[%s0 + $0x8c] sm:$0xf]
  %v57 = vld [vmem:[%s0 + $0x90] sm:$0xf]
  %v58 = vld [vmem:[%s0 + $0x94] sm:$0xf]
  %v59 = vld [vmem:[%s0 + $0x98] sm:$0xf]
  %v60 = vld [vmem:[%s0 + $0x9c] sm:$0xf]
  %v61 = vld [vmem:[%s0 + $0xa0] sm:$0xf]
  %v62 = vld [vmem:[%s0 + $0xa4] sm:$0xf]
  %v63 = vld [vmem:[%s0 + $0xa8] sm:$0xf]
  %v64 = vld [vmem:[%s0 + $0xac] sm:$0xf]
  %v65 = vld [vmem:[%s0 + $0xb0] sm:$0xf]
  %v66 = vld [vmem:[%s0 + $0xb4] sm:$0xf]
  %v67 = vld [vmem:[%s0 + $0xb8] sm:$0xf]
  %v68 = vld [vmem:[%s0 + $0xbc] sm:$0xf]
  %v69 = vld [vmem:[%s0 + $0xc0] sm:$0xf]
  %v70 = vld [vmem:[%s0 + $0xc4] sm:$0xf]
  %v71 = vld [vmem:[%s0 + $0xc8] sm:$0xf]
  %v72 = vld [vmem:[%s0 + $0xcc] sm:$0xf]
  %v73 = vld [vmem:[%s0 + $0xd0] sm:$0xf]
  %v74 = vld [vmem:[%s0 + $0xd4] sm:$0xf]
  %v75 = vld [vmem:[%s0 + $0xd8] sm:$0xf]
  %v76 = vld [vmem:[%s0 + $0xdc] sm:$0xf]
  %v77 = vld [vmem:[%s0 + $0xe0] sm:$0xf]
  %v78 = vld [vmem:[%s0 + $0xe4] sm:$0xf]
  %v79 = vld [vmem:[%s0 + $0xe8] sm:$0xf]
  %v80 = vld [vmem:[%s0 + $0xec] sm:$0xf]
  %v81 = vld [vmem:[%s0 + $0xf0] sm:$0xf]
  %v82 = vld [vmem:[%s0 + $0xf4] sm:$0xf]
  %v83 = vld [vmem:[%s0 + $0xf8] sm:$0xf]
  %v84 = vld [vmem:[%s0 + $0xfc] sm:$0xf]
  %v85 = vld [vmem:[%s1] sm:$0xf]
  %v86 = vld [vmem:[%s1 + $0x4] sm:$0x1]
  %v87 = vld [vmem:[%s2] sm:$0x1]
  %v89 = vperm.slane %v87, 0
  %v155 = vunpack.c.l.b16 %v21
  %v156 = vunpack.c.l.b16 %v22
  %v157 = vunpack.c.l.b16 %v23
  %v158 = vunpack.c.l.b16 %v24
  %v159 = vunpack.c.l.b16 %v25
  %v160 = vunpack.c.l.b16 %v26
  %v161 = vunpack.c.l.b16 %v27
  %v162 = vunpack.c.l.b16 %v28
  %v163 = vunpack.c.l.b16 %v29
  %v164 = vunpack.c.l.b16 %v30
  %v165 = vunpack.c.l.b16 %v31
  %v166 = vunpack.c.l.b16 %v32
  %v167 = vunpack.c.l.b16 %v33
  %v168 = vunpack.c.l.b16 %v34
  %v169 = vunpack.c.l.b16 %v35
  %v170 = vunpack.c.l.b16 %v36
  %v171 = vunpack.c.l.b16 %v37
  %v172 = vunpack.c.l.b16 %v38
  %v173 = vunpack.c.l.b16 %v39
  %v174 = vunpack.c.l.b16 %v40
  %v175 = vunpack.c.l.b16 %v41
  %v176 = vunpack.c.l.b16 %v42
  %v177 = vunpack.c.l.b16 %v43
  %v178 = vunpack.c.l.b16 %v44
  %v179 = vunpack.c.l.b16 %v45
  %v180 = vunpack.c.l.b16 %v46
  %v181 = vunpack.c.l.b16 %v47
  %v182 = vunpack.c.l.b16 %v48
  %v183 = vunpack.c.l.b16 %v49
  %v184 = vunpack.c.l.b16 %v50
  %v185 = vunpack.c.l.b16 %v51
  %v186 = vunpack.c.l.b16 %v52
  %v187 = vunpack.c.l.b16 %v53
  %v188 = vunpack.c.l.b16 %v54
  %v189 = vunpack.c.l.b16 %v55
  %v190 = vunpack.c.l.b16 %v56
  %v191 = vunpack.c.l.b16 %v57
  %v192 = vunpack.c.l.b16 %v58
  %v193 = vunpack.c.l.b16 %v59
  %v194 = vunpack.c.l.b16 %v60
  %v195 = vunpack.c.l.b16 %v61
  %v196 = vunpack.c.l.b16 %v62
  %v197 = vunpack.c.l.b16 %v63
  %v198 = vunpack.c.l.b16 %v64
  %v199 = vunpack.c.l.b16 %v65
  %v200 = vunpack.c.l.b16 %v66
  %v201 = vunpack.c.l.b16 %v67
  %v202 = vunpack.c.l.b16 %v68
  %v203 = vunpack.c.l.b16 %v69
  %v204 = vunpack.c.l.b16 %v70
  %v205 = vunpack.c.l.b16 %v71
  %v206 = vunpack.c.l.b16 %v72
  %v207 = vunpack.c.l.b16 %v73
  %v208 = vunpack.c.l.b16 %v74
  %v209 = vunpack.c.l.b16 %v75
  %v210 = vunpack.c.l.b16 %v76
  %v211 = vunpack.c.l.b16 %v77
  %v212 = vunpack.c.l.b16 %v78
  %v213 = vunpack.c.l.b16 %v79
  %v214 = vunpack.c.l.b16 %v80
  %v215 = vunpack.c.l.b16 %v81
  %v216 = vunpack.c.l.b16 %v82
  %v217 = vunpack.c.l.b16 %v83
  %v218 = vunpack.c.l.b16 %v84
  %v219 = vpack.c.b16 %v156, %v155
  %v220 = vpack.c.b16 %v158, %v157
  %v221 = vpack.c.b16 %v160, %v159
  %v222 = vpack.c.b16 %v162, %v161
  %v223 = vpack.c.b16 %v164, %v163
  %v224 = vpack.c.b16 %v166, %v165
  %v225 = vpack.c.b16 %v168, %v167
  %v226 = vpack.c.b16 %v170, %v169
  %v227 = vpack.c.b16 %v172, %v171
  %v228 = vpack.c.b16 %v174, %v173
  %v229 = vpack.c.b16 %v176, %v175
  %v230 = vpack.c.b16 %v178, %v177
  %v231 = vpack.c.b16 %v180, %v179
  %v232 = vpack.c.b16 %v182, %v181
  %v233 = vpack.c.b16 %v184, %v183
  %v234 = vpack.c.b16 %v186, %v185
  %v235 = vpack.c.b16 %v188, %v187
  %v236 = vpack.c.b16 %v190, %v189
  %v237 = vpack.c.b16 %v192, %v191
  %v238 = vpack.c.b16 %v194, %v193
  %v239 = vpack.c.b16 %v196, %v195
  %v240 = vpack.c.b16 %v198, %v197
  %v241 = vpack.c.b16 %v200, %v199
  %v242 = vpack.c.b16 %v202, %v201
  %v243 = vpack.c.b16 %v204, %v203
  %v244 = vpack.c.b16 %v206, %v205
  %v245 = vpack.c.b16 %v208, %v207
  %v246 = vpack.c.b16 %v210, %v209
  %v247 = vpack.c.b16 %v212, %v211
  %v248 = vpack.c.b16 %v214, %v213
  %v249 = vpack.c.b16 %v216, %v215
  %v250 = vpack.c.b16 %v218, %v217
  %v253 = vunpack.c.l.b16 %v85
  %v254 = vunpack.c.l.b16 %v86
  %v255 = vpack.c.b16 %v254, %v253
  %vm256 = vcmask 72704
  %v258 = vsel %vm256, %v219, 0
  %v261 = vsel %vm256, %v220, 0
  %v264 = vsel %vm256, %v221, 0
  %v267 = vsel %vm256, %v222, 0
  %v270 = vsel %vm256, %v223, 0
  %v273 = vsel %vm256, %v224, 0
  %v276 = vsel %vm256, %v225, 0
  %v279 = vsel %vm256, %v226, 0
  %v282 = vsel %vm256, %v227, 0
  %v285 = vsel %vm256, %v228, 0
  %v288 = vsel %vm256, %v229, 0
  %v291 = vsel %vm256, %v230, 0
  %v294 = vsel %vm256, %v231, 0
  %v297 = vsel %vm256, %v232, 0
  %v300 = vsel %vm256, %v233, 0
  %v303 = vsel %vm256, %v234, 0
  %v306 = vsel %vm256, %v235, 0
  %v309 = vsel %vm256, %v236, 0
  %v312 = vsel %vm256, %v237, 0
  %v315 = vsel %vm256, %v238, 0
  %v318 = vsel %vm256, %v239, 0
  %v321 = vsel %vm256, %v240, 0
  %v324 = vsel %vm256, %v241, 0
  %v327 = vsel %vm256, %v242, 0
  %v330 = vsel %vm256, %v243, 0
  %v333 = vsel %vm256, %v244, 0
  %v336 = vsel %vm256, %v245, 0
  %v339 = vsel %vm256, %v246, 0
  %v342 = vsel %vm256, %v247, 0
  %v345 = vsel %vm256, %v248, 0
  %v348 = vsel %vm256, %v249, 0
  %v351 = vsel %vm256, %v250, 0
  %vm353 = vcmask 1043456
  %vm354 = vcmask 1044480
  %v355 = vsel %vm353, 4294967295, 65535
  %v356 = vsel %vm354, %v355, 0
  %v358 = vand.u32 %v255, %v356
  %360 = vmatpush.bf16.msra.mxu0 0
  %361 = vmatpush.bf16.msra.mxu0 0
  %362 = vmatpush.bf16.msra.mxu0 0
  %363 = vmatpush.bf16.msra.mxu0 0
  %364 = vmatpush.bf16.msra.mxu0 0
  %365 = vmatpush.bf16.msra.mxu0 0
  %366 = vmatpush.bf16.msra.mxu0 0
  %367 = vmatpush.bf16.msra.mxu0 %v358
  %368 = vmatmul.bf16.gmra.mxu0 %v258
  %v369 = vpop.f32.mrf.mxu0
  %v370 = vadd.f32 %v89, %v369
  %v371 = vpop.f32.mrf.mxu0
  %v372 = vadd.f32 %v89, %v371
  %373 = vmatmul.bf16.gmra.mxu0 %v261
  %v374 = vpop.f32.mrf.mxu0
  %v375 = vadd.f32 %v89, %v374
  %v376 = vpop.f32.mrf.mxu0
  %v377 = vadd.f32 %v89, %v376
  %378 = vmatmul.bf16.gmra.mxu0 %v264
  %v379 = vpop.f32.mrf.mxu0
  %v380 = vadd.f32 %v89, %v379
  %v381 = vpop.f32.mrf.mxu0
  %v382 = vadd.f32 %v89, %v381
  %383 = vmatmul.bf16.gmra.mxu0 %v267
  %v384 = vpop.f32.mrf.mxu0
  %v385 = vadd.f32 %v89, %v384
  %v386 = vpop.f32.mrf.mxu0
  %v387 = vadd.f32 %v89, %v386
  %388 = vmatmul.bf16.gmra.mxu0 %v270
  %v389 = vpop.f32.mrf.mxu0
  %v390 = vadd.f32 %v89, %v389
  %v391 = vpop.f32.mrf.mxu0
  %v392 = vadd.f32 %v89, %v391
  %393 = vmatmul.bf16.gmra.mxu0 %v273
  %v394 = vpop.f32.mrf.mxu0
  %v395 = vadd.f32 %v89, %v394
  %v396 = vpop.f32.mrf.mxu0
  %v397 = vadd.f32 %v89, %v396
  %398 = vmatmul.bf16.gmra.mxu0 %v276
  %v399 = vpop.f32.mrf.mxu0
  %v400 = vadd.f32 %v89, %v399
  %v401 = vpop.f32.mrf.mxu0
  %v402 = vadd.f32 %v89, %v401
  %403 = vmatmul.bf16.gmra.mxu0 %v279
  %v404 = vpop.f32.mrf.mxu0
  %v405 = vadd.f32 %v89, %v404
  %v406 = vpop.f32.mrf.mxu0
  %v407 = vadd.f32 %v89, %v406
  %408 = vmatmul.bf16.gmra.mxu0 %v282
  %v409 = vpop.f32.mrf.mxu0
  %v410 = vadd.f32 %v89, %v409
  %v411 = vpop.f32.mrf.mxu0
  %v412 = vadd.f32 %v89, %v411
  %413 = vmatmul.bf16.gmra.mxu0 %v285
  %v414 = vpop.f32.mrf.mxu0
  %v415 = vadd.f32 %v89, %v414
  %v416 = vpop.f32.mrf.mxu0
  %v417 = vadd.f32 %v89, %v416
  %418 = vmatmul.bf16.gmra.mxu0 %v288
  %v419 = vpop.f32.mrf.mxu0
  %v420 = vadd.f32 %v89, %v419
  %v421 = vpop.f32.mrf.mxu0
  %v422 = vadd.f32 %v89, %v421
  %423 = vmatmul.bf16.gmra.mxu0 %v291
  %v424 = vpop.f32.mrf.mxu0
  %v425 = vadd.f32 %v89, %v424
  %v426 = vpop.f32.mrf.mxu0
  %v427 = vadd.f32 %v89, %v426
  %428 = vmatmul.bf16.gmra.mxu0 %v294
  %v429 = vpop.f32.mrf.mxu0
  %v430 = vadd.f32 %v89, %v429
  %v431 = vpop.f32.mrf.mxu0
  %v432 = vadd.f32 %v89, %v431
  %433 = vmatmul.bf16.gmra.mxu0 %v297
  %v434 = vpop.f32.mrf.mxu0
  %v435 = vadd.f32 %v89, %v434
  %v436 = vpop.f32.mrf.mxu0
  %v437 = vadd.f32 %v89, %v436
  %438 = vmatmul.bf16.gmra.mxu0 %v300
  %v439 = vpop.f32.mrf.mxu0
  %v440 = vadd.f32 %v89, %v439
  %v441 = vpop.f32.mrf.mxu0
  %v442 = vadd.f32 %v89, %v441
  %443 = vmatmul.bf16.gmra.mxu0 %v303
  %v444 = vpop.f32.mrf.mxu0
  %v445 = vadd.f32 %v89, %v444
  %v446 = vpop.f32.mrf.mxu0
  %v447 = vadd.f32 %v89, %v446
  %448 = vmatmul.bf16.gmra.mxu0 %v306
  %v449 = vpop.f32.mrf.mxu0
  %v450 = vadd.f32 %v89, %v449
  %v451 = vpop.f32.mrf.mxu0
  %v452 = vadd.f32 %v89, %v451
  %453 = vmatmul.bf16.gmra.mxu0 %v309
  %v454 = vpop.f32.mrf.mxu0
  %v455 = vadd.f32 %v89, %v454
  %v456 = vpop.f32.mrf.mxu0
  %v457 = vadd.f32 %v89, %v456
  %458 = vmatmul.bf16.gmra.mxu0 %v312
  %v459 = vpop.f32.mrf.mxu0
  %v460 = vadd.f32 %v89, %v459
  %v461 = vpop.f32.mrf.mxu0
  %v462 = vadd.f32 %v89, %v461
  %463 = vmatmul.bf16.gmra.mxu0 %v315
  %v464 = vpop.f32.mrf.mxu0
  %v465 = vadd.f32 %v89, %v464
  %v466 = vpop.f32.mrf.mxu0
  %v467 = vadd.f32 %v89, %v466
  %468 = vmatmul.bf16.gmra.mxu0 %v318
  %v469 = vpop.f32.mrf.mxu0
  %v470 = vadd.f32 %v89, %v469
  %v471 = vpop.f32.mrf.mxu0
  %v472 = vadd.f32 %v89, %v471
  %473 = vmatmul.bf16.gmra.mxu0 %v321
  %v474 = vpop.f32.mrf.mxu0
  %v475 = vadd.f32 %v89, %v474
  %v476 = vpop.f32.mrf.mxu0
  %v477 = vadd.f32 %v89, %v476
  %478 = vmatmul.bf16.gmra.mxu0 %v324
  %v479 = vpop.f32.mrf.mxu0
  %v480 = vadd.f32 %v89, %v479
  %v481 = vpop.f32.mrf.mxu0
  %v482 = vadd.f32 %v89, %v481
  %483 = vmatmul.bf16.gmra.mxu0 %v327
  %v484 = vpop.f32.mrf.mxu0
  %v485 = vadd.f32 %v89, %v484
  %v486 = vpop.f32.mrf.mxu0
  %v487 = vadd.f32 %v89, %v486
  %488 = vmatmul.bf16.gmra.mxu0 %v330
  %v489 = vpop.f32.mrf.mxu0
  %v490 = vadd.f32 %v89, %v489
  %v491 = vpop.f32.mrf.mxu0
  %v492 = vadd.f32 %v89, %v491
  %493 = vmatmul.bf16.gmra.mxu0 %v333
  %v494 = vpop.f32.mrf.mxu0
  %v495 = vadd.f32 %v89, %v494
  %v496 = vpop.f32.mrf.mxu0
  %v497 = vadd.f32 %v89, %v496
  %498 = vmatmul.bf16.gmra.mxu0 %v336
  %v499 = vpop.f32.mrf.mxu0
  %v500 = vadd.f32 %v89, %v499
  %v501 = vpop.f32.mrf.mxu0
  %v502 = vadd.f32 %v89, %v501
  %503 = vmatmul.bf16.gmra.mxu0 %v339
  %v504 = vpop.f32.mrf.mxu0
  %v505 = vadd.f32 %v89, %v504
  %v506 = vpop.f32.mrf.mxu0
  %v507 = vadd.f32 %v89, %v506
  %508 = vmatmul.bf16.gmra.mxu0 %v342
  %v509 = vpop.f32.mrf.mxu0
  %v510 = vadd.f32 %v89, %v509
  %v511 = vpop.f32.mrf.mxu0
  %v512 = vadd.f32 %v89, %v511
  %513 = vmatmul.bf16.gmra.mxu0 %v345
  %v514 = vpop.f32.mrf.mxu0
  %v515 = vadd.f32 %v89, %v514
  %v516 = vpop.f32.mrf.mxu0
  %v517 = vadd.f32 %v89, %v516
  %518 = vmatmul.bf16.gmra.mxu0 %v348
  %v519 = vpop.f32.mrf.mxu0
  %v520 = vadd.f32 %v89, %v519
  %v521 = vpop.f32.mrf.mxu0
  %v522 = vadd.f32 %v89, %v521
  %523 = vmatmul.bf16.gmra.mxu0 %v351
  %v524 = vpop.f32.mrf.mxu0
  %v525 = vadd.f32 %v89, %v524
  %v526 = vpop.f32.mrf.mxu0
  %v527 = vadd.f32 %v89, %v526
  %528 = vdwg.mxu0
  %v529 = vadd.f32 %v370, %v372
  %v530 = vadd.f32 %v529, %v375
  %v531 = vadd.f32 %v530, %v377
  %v532 = vadd.f32 %v531, %v380
  %v533 = vadd.f32 %v532, %v382
  %v534 = vadd.f32 %v533, %v385
  %v535 = vadd.f32 %v534, %v387
  %v536 = vadd.f32 %v535, %v390
  %v537 = vadd.f32 %v536, %v392
  %v538 = vadd.f32 %v537, %v395
  %v539 = vadd.f32 %v538, %v397
  %v540 = vadd.f32 %v539, %v400
  %v541 = vadd.f32 %v540, %v402
  %v542 = vadd.f32 %v541, %v405
  %v543 = vadd.f32 %v542, %v407
  %v544 = vadd.f32 %v543, %v410
  %v545 = vadd.f32 %v544, %v412
  %v546 = vadd.f32 %v545, %v415
  %v547 = vadd.f32 %v546, %v417
  %v548 = vadd.f32 %v547, %v420
  %v549 = vadd.f32 %v548, %v422
  %v550 = vadd.f32 %v549, %v425
  %v551 = vadd.f32 %v550, %v427
  %v552 = vadd.f32 %v551, %v430
  %v553 = vadd.f32 %v552, %v432
  %v554 = vadd.f32 %v553, %v435
  %v555 = vadd.f32 %v554, %v437
  %v556 = vadd.f32 %v555, %v440
  %v557 = vadd.f32 %v556, %v442
  %v558 = vadd.f32 %v557, %v445
  %v559 = vadd.f32 %v558, %v447
  %v560 = vadd.f32 %v559, %v450
  %v561 = vadd.f32 %v560, %v452
  %v562 = vadd.f32 %v561, %v455
  %v563 = vadd.f32 %v562, %v457
  %v564 = vadd.f32 %v563, %v460
  %v565 = vadd.f32 %v564, %v462
  %v566 = vadd.f32 %v565, %v465
  %v567 = vadd.f32 %v566, %v467
  %v568 = vadd.f32 %v567, %v470
  %v569 = vadd.f32 %v568, %v472
  %v570 = vadd.f32 %v569, %v475
  %v571 = vadd.f32 %v570, %v477
  %v572 = vadd.f32 %v571, %v480
  %v573 = vadd.f32 %v572, %v482
  %v574 = vadd.f32 %v573, %v485
  %v575 = vadd.f32 %v574, %v487
  %v576 = vadd.f32 %v575, %v490
  %v577 = vadd.f32 %v576, %v492
  %v578 = vadd.f32 %v577, %v495
  %v579 = vadd.f32 %v578, %v497
  %v580 = vadd.f32 %v579, %v500
  %v581 = vadd.f32 %v580, %v502
  %v582 = vadd.f32 %v581, %v505
  %v583 = vadd.f32 %v582, %v507
  %v584 = vadd.f32 %v583, %v510
  %v585 = vadd.f32 %v584, %v512
  %v586 = vadd.f32 %v585, %v515
  %v587 = vadd.f32 %v586, %v517
  %v588 = vadd.f32 %v587, %v520
  %v589 = vadd.f32 %v588, %v522
  %v590 = vadd.f32 %v589, %v525
  %v591 = vadd.f32 %v590, %v527
  %v592 = vrot.slane %v591, 4
  %v593 = vadd.f32 %v591, %v592
  %v594 = vrot.slane %v593, 2
  %v595 = vadd.f32 %v593, %v594
  %v596 = vrot.slane %v595, 1
  %v597 = vadd.f32 %v595, %v596
  %v598 = vmul.f32 %v597, 0.001953125
  %v599 = vsub.f32 %v370, %v598
  %v600 = vsub.f32 %v372, %v598
  %v601 = vsub.f32 %v375, %v598
  %v602 = vsub.f32 %v377, %v598
  %v603 = vsub.f32 %v380, %v598
  %v604 = vsub.f32 %v382, %v598
  %v605 = vsub.f32 %v385, %v598
  %v606 = vsub.f32 %v387, %v598
  %v607 = vsub.f32 %v390, %v598
  %v608 = vsub.f32 %v392, %v598
  %v609 = vsub.f32 %v395, %v598
  %v610 = vsub.f32 %v397, %v598
  %v611 = vsub.f32 %v400, %v598
  %v612 = vsub.f32 %v402, %v598
  %v613 = vsub.f32 %v405, %v598
  %v614 = vsub.f32 %v407, %v598
  %v615 = vsub.f32 %v410, %v598
  %v616 = vsub.f32 %v412, %v598
  %v617 = vsub.f32 %v415, %v598
  %v618 = vsub.f32 %v417, %v598
  %v619 = vsub.f32 %v420, %v598
  %v620 = vsub.f32 %v422, %v598
  %v621 = vsub.f32 %v425, %v598
  %v622 = vsub.f32 %v427, %v598
  %v623 = vsub.f32 %v430, %v598
  %v624 = vsub.f32 %v432, %v598
  %v625 = vsub.f32 %v435, %v598
  %v626 = vsub.f32 %v437, %v598
  %v627 = vsub.f32 %v440, %v598
  %v628 = vsub.f32 %v442, %v598
  %v629 = vsub.f32 %v445, %v598
  %v630 = vsub.f32 %v447, %v598
  %v631 = vsub.f32 %v450, %v598
  %v632 = vsub.f32 %v452, %v598
  %v633 = vsub.f32 %v455, %v598
  %v634 = vsub.f32 %v457, %v598
  %v635 = vsub.f32 %v460, %v598
  %v636 = vsub.f32 %v462, %v598
  %v637 = vsub.f32 %v465, %v598
  %v638 = vsub.f32 %v467, %v598
  %v639 = vsub.f32 %v470, %v598
  %v640 = vsub.f32 %v472, %v598
  %v641 = vsub.f32 %v475, %v598
  %v642 = vsub.f32 %v477, %v598
  %v643 = vsub.f32 %v480, %v598
  %v644 = vsub.f32 %v482, %v598
  %v645 = vsub.f32 %v485, %v598
  %v646 = vsub.f32 %v487, %v598
  %v647 = vsub.f32 %v490, %v598
  %v648 = vsub.f32 %v492, %v598
  %v649 = vsub.f32 %v495, %v598
  %v650 = vsub.f32 %v497, %v598
  %v651 = vsub.f32 %v500, %v598
  %v652 = vsub.f32 %v502, %v598
  %v653 = vsub.f32 %v505, %v598
  %v654 = vsub.f32 %v507, %v598
  %v655 = vsub.f32 %v510, %v598
  %v656 = vsub.f32 %v512, %v598
  %v657 = vsub.f32 %v515, %v598
  %v658 = vsub.f32 %v517, %v598
  %v659 = vsub.f32 %v520, %v598
  %v660 = vsub.f32 %v522, %v598
  %v661 = vsub.f32 %v525, %v598
  %v662 = vsub.f32 %v527, %v598
  %v663 = vmul.f32 %v599, %v599
  %v664 = vmul.f32 %v600, %v600
  %v665 = vmul.f32 %v601, %v601
  %v666 = vmul.f32 %v602, %v602
  %v667 = vmul.f32 %v603, %v603
  %v668 = vmul.f32 %v604, %v604
  %v669 = vmul.f32 %v605, %v605
  %v670 = vmul.f32 %v606, %v606
  %v671 = vmul.f32 %v607, %v607
  %v672 = vmul.f32 %v608, %v608
  %v673 = vmul.f32 %v609, %v609
  %v674 = vmul.f32 %v610, %v610
  %v675 = vmul.f32 %v611, %v611
  %v676 = vmul.f32 %v612, %v612
  %v677 = vmul.f32 %v613, %v613
  %v678 = vmul.f32 %v614, %v614
  %v679 = vmul.f32 %v615, %v615
  %v680 = vmul.f32 %v616, %v616
  %v681 = vmul.f32 %v617, %v617
  %v682 = vmul.f32 %v618, %v618
  %v683 = vmul.f32 %v619, %v619
  %v684 = vmul.f32 %v620, %v620
  %v685 = vmul.f32 %v621, %v621
  %v686 = vmul.f32 %v622, %v622
  %v687 = vmul.f32 %v623, %v623
  %v688 = vmul.f32 %v624, %v624
  %v689 = vmul.f32 %v625, %v625
  %v690 = vmul.f32 %v626, %v626
  %v691 = vmul.f32 %v627, %v627
  %v692 = vmul.f32 %v628, %v628
  %v693 = vmul.f32 %v629, %v629
  %v694 = vmul.f32 %v630, %v630
  %v695 = vmul.f32 %v631, %v631
  %v696 = vmul.f32 %v632, %v632
  %v697 = vmul.f32 %v633, %v633
  %v698 = vmul.f32 %v634, %v634
  %v699 = vmul.f32 %v635, %v635
  %v700 = vmul.f32 %v636, %v636
  %v701 = vmul.f32 %v637, %v637
  %v702 = vmul.f32 %v638, %v638
  %v703 = vmul.f32 %v639, %v639
  %v704 = vmul.f32 %v640, %v640
  %v705 = vmul.f32 %v641, %v641
  %v706 = vmul.f32 %v642, %v642
  %v707 = vmul.f32 %v643, %v643
  %v708 = vmul.f32 %v644, %v644
  %v709 = vmul.f32 %v645, %v645
  %v710 = vmul.f32 %v646, %v646
  %v711 = vmul.f32 %v647, %v647
  %v712 = vmul.f32 %v648, %v648
  %v713 = vmul.f32 %v649, %v649
  %v714 = vmul.f32 %v650, %v650
  %v715 = vmul.f32 %v651, %v651
  %v716 = vmul.f32 %v652, %v652
  %v717 = vmul.f32 %v653, %v653
  %v718 = vmul.f32 %v654, %v654
  %v719 = vmul.f32 %v655, %v655
  %v720 = vmul.f32 %v656, %v656
  %v721 = vmul.f32 %v657, %v657
  %v722 = vmul.f32 %v658, %v658
  %v723 = vmul.f32 %v659, %v659
  %v724 = vmul.f32 %v660, %v660
  %v725 = vmul.f32 %v661, %v661
  %v726 = vmul.f32 %v662, %v662
  %v727 = vadd.f32 %v663, %v664
  %v728 = vadd.f32 %v727, %v665
  %v729 = vadd.f32 %v728, %v666
  %v730 = vadd.f32 %v729, %v667
  %v731 = vadd.f32 %v730, %v668
  %v732 = vadd.f32 %v731, %v669
  %v733 = vadd.f32 %v732, %v670
  %v734 = vadd.f32 %v733, %v671
  %v735 = vadd.f32 %v734, %v672
  %v736 = vadd.f32 %v735, %v673
  %v737 = vadd.f32 %v736, %v674
  %v738 = vadd.f32 %v737, %v675
  %v739 = vadd.f32 %v738, %v676
  %v740 = vadd.f32 %v739, %v677
  %v741 = vadd.f32 %v740, %v678
  %v742 = vadd.f32 %v741, %v679
  %v743 = vadd.f32 %v742, %v680
  %v744 = vadd.f32 %v743, %v681
  %v745 = vadd.f32 %v744, %v682
  %v746 = vadd.f32 %v745, %v683
  %v747 = vadd.f32 %v746, %v684
  %v748 = vadd.f32 %v747, %v685
  %v749 = vadd.f32 %v748, %v686
  %v750 = vadd.f32 %v749, %v687
  %v751 = vadd.f32 %v750, %v688
  %v752 = vadd.f32 %v751, %v689
  %v753 = vadd.f32 %v752, %v690
  %v754 = vadd.f32 %v753, %v691
  %v755 = vadd.f32 %v754, %v692
  %v756 = vadd.f32 %v755, %v693
  %v757 = vadd.f32 %v756, %v694
  %v758 = vadd.f32 %v757, %v695
  %v759 = vadd.f32 %v758, %v696
  %v760 = vadd.f32 %v759, %v697
  %v761 = vadd.f32 %v760, %v698
  %v762 = vadd.f32 %v761, %v699
  %v763 = vadd.f32 %v762, %v700
  %v764 = vadd.f32 %v763, %v701
  %v765 = vadd.f32 %v764, %v702
  %v766 = vadd.f32 %v765, %v703
  %v767 = vadd.f32 %v766, %v704
  %v768 = vadd.f32 %v767, %v705
  %v769 = vadd.f32 %v768, %v706
  %v770 = vadd.f32 %v769, %v707
  %v771 = vadd.f32 %v770, %v708
  %v772 = vadd.f32 %v771, %v709
  %v773 = vadd.f32 %v772, %v710
  %v774 = vadd.f32 %v773, %v711
  %v775 = vadd.f32 %v774, %v712
  %v776 = vadd.f32 %v775, %v713
  %v777 = vadd.f32 %v776, %v714
  %v778 = vadd.f32 %v777, %v715
  %v779 = vadd.f32 %v778, %v716
  %v780 = vadd.f32 %v779, %v717
  %v781 = vadd.f32 %v780, %v718
  %v782 = vadd.f32 %v781, %v719
  %v783 = vadd.f32 %v782, %v720
  %v784 = vadd.f32 %v783, %v721
  %v785 = vadd.f32 %v784, %v722
  %v786 = vadd.f32 %v785, %v723
  %v787 = vadd.f32 %v786, %v724
  %v788 = vadd.f32 %v787, %v725
  %v789 = vadd.f32 %v788, %v726
  %v790 = vrot.slane %v789, 4
  %v791 = vadd.f32 %v789, %v790
  %v792 = vrot.slane %v791, 2
  %v793 = vadd.f32 %v791, %v792
  %v794 = vrot.slane %v793, 1
  %v795 = vadd.f32 %v793, %v794
  %v796 = vmul.f32 %v795, 0.001953125
  %v797 = vld [vmem:[%s3] sm:$0x1]
  %v798 = vadd.f32 %v796, 1e-05
  %v799 = vrsqrt.pop %v798
  %v800 = vmul.f32 %v799, %v798
  %v801 = vmul.f32 %v800, %v799
  %v802 = vmul.f32 0.5, %v801
  %v803 = vsub.f32 1.5, %v802
  %v804 = vmul.f32 %v799, %v803
  %vm805 = vweird.f32 %v798
  %vm806 = vweird.f32 %v799
  %vm807 = vmor %vm805, %vm806
  %v808 = vsel %vm807, %v799, %v804
  %v809 = vmul.f32 %v797, %v808
  %v811 = vperm.slane %v809, 0
  %v813 = vmul.f32 %v599, %v811
  %v814 = vmul.f32 %v600, %v811
  %v815 = vmul.f32 %v601, %v811
  %v816 = vmul.f32 %v602, %v811
  %v817 = vmul.f32 %v603, %v811
  %v818 = vmul.f32 %v604, %v811
  %v819 = vmul.f32 %v605, %v811
  %v820 = vmul.f32 %v606, %v811
  %v821 = vmul.f32 %v607, %v811
  %v822 = vmul.f32 %v608, %v811
  %v823 = vmul.f32 %v609, %v811
  %v824 = vmul.f32 %v610, %v811
  %v825 = vmul.f32 %v611, %v811
  %v826 = vmul.f32 %v612, %v811
  %v827 = vmul.f32 %v613, %v811
  %v828 = vmul.f32 %v614, %v811
  %v829 = vmul.f32 %v615, %v811
  %v830 = vmul.f32 %v616, %v811
  %v831 = vmul.f32 %v617, %v811
  %v832 = vmul.f32 %v618, %v811
  %v833 = vmul.f32 %v619, %v811
  %v834 = vmul.f32 %v620, %v811
  %v835 = vmul.f32 %v621, %v811
  %v836 = vmul.f32 %v622, %v811
  %v837 = vmul.f32 %v623, %v811
  %v838 = vmul.f32 %v624, %v811
  %v839 = vmul.f32 %v625, %v811
  %v840 = vmul.f32 %v626, %v811
  %v841 = vmul.f32 %v627, %v811
  %v842 = vmul.f32 %v628, %v811
  %v843 = vmul.f32 %v629, %v811
  %v844 = vmul.f32 %v630, %v811
  %v845 = vmul.f32 %v631, %v811
  %v846 = vmul.f32 %v632, %v811
  %v847 = vmul.f32 %v633, %v811
  %v848 = vmul.f32 %v634, %v811
  %v849 = vmul.f32 %v635, %v811
  %v850 = vmul.f32 %v636, %v811
  %v851 = vmul.f32 %v637, %v811
  %v852 = vmul.f32 %v638, %v811
  %v853 = vmul.f32 %v639, %v811
  %v854 = vmul.f32 %v640, %v811
  %v855 = vmul.f32 %v641, %v811
  %v856 = vmul.f32 %v642, %v811
  %v857 = vmul.f32 %v643, %v811
  %v858 = vmul.f32 %v644, %v811
  %v859 = vmul.f32 %v645, %v811
  %v860 = vmul.f32 %v646, %v811
  %v861 = vmul.f32 %v647, %v811
  %v862 = vmul.f32 %v648, %v811
  %v863 = vmul.f32 %v649, %v811
  %v864 = vmul.f32 %v650, %v811
  %v865 = vmul.f32 %v651, %v811
  %v866 = vmul.f32 %v652, %v811
  %v867 = vmul.f32 %v653, %v811
  %v868 = vmul.f32 %v654, %v811
  %v869 = vmul.f32 %v655, %v811
  %v870 = vmul.f32 %v656, %v811
  %v871 = vmul.f32 %v657, %v811
  %v872 = vmul.f32 %v658, %v811
  %v873 = vmul.f32 %v659, %v811
  %v874 = vmul.f32 %v660, %v811
  %v875 = vmul.f32 %v661, %v811
  %v876 = vmul.f32 %v662, %v811
  %v877 = vld [vmem:[%s4] sm:$0x1]
  %v879 = vperm.slane %v877, 0
  %v881 = vadd.f32 %v813, %v879
  %v882 = vadd.f32 %v814, %v879
  %v883 = vadd.f32 %v815, %v879
  %v884 = vadd.f32 %v816, %v879
  %v885 = vadd.f32 %v817, %v879
  %v886 = vadd.f32 %v818, %v879
  %v887 = vadd.f32 %v819, %v879
  %v888 = vadd.f32 %v820, %v879
  %v889 = vadd.f32 %v821, %v879
  %v890 = vadd.f32 %v822, %v879
  %v891 = vadd.f32 %v823, %v879
  %v892 = vadd.f32 %v824, %v879
  %v893 = vadd.f32 %v825, %v879
  %v894 = vadd.f32 %v826, %v879
  %v895 = vadd.f32 %v827, %v879
  %v896 = vadd.f32 %v828, %v879
  %v897 = vadd.f32 %v829, %v879
  %v898 = vadd.f32 %v830, %v879
  %v899 = vadd.f32 %v831, %v879
  %v900 = vadd.f32 %v832, %v879
  %v901 = vadd.f32 %v833, %v879
  %v902 = vadd.f32 %v834, %v879
  %v903 = vadd.f32 %v835, %v879
  %v904 = vadd.f32 %v836, %v879
  %v905 = vadd.f32 %v837, %v879
  %v906 = vadd.f32 %v838, %v879
  %v907 = vadd.f32 %v839, %v879
  %v908 = vadd.f32 %v840, %v879
  %v909 = vadd.f32 %v841, %v879
  %v910 = vadd.f32 %v842, %v879
  %v911 = vadd.f32 %v843, %v879
  %v912 = vadd.f32 %v844, %v879
  %v913 = vadd.f32 %v845, %v879
  %v914 = vadd.f32 %v846, %v879
  %v915 = vadd.f32 %v847, %v879
  %v916 = vadd.f32 %v848, %v879
  %v917 = vadd.f32 %v849, %v879
  %v918 = vadd.f32 %v850, %v879
  %v919 = vadd.f32 %v851, %v879
  %v920 = vadd.f32 %v852, %v879
  %v921 = vadd.f32 %v853, %v879
  %v922 = vadd.f32 %v854, %v879
  %v923 = vadd.f32 %v855, %v879
  %v924 = vadd.f32 %v856, %v879
  %v925 = vadd.f32 %v857, %v879
  %v926 = vadd.f32 %v858, %v879
  %v927 = vadd.f32 %v859, %v879
  %v928 = vadd.f32 %v860, %v879
  %v929 = vadd.f32 %v861, %v879
  %v930 = vadd.f32 %v862, %v879
  %v931 = vadd.f32 %v863, %v879
  %v932 = vadd.f32 %v864, %v879
  %v933 = vadd.f32 %v865, %v879
  %v934 = vadd.f32 %v866, %v879
  %v935 = vadd.f32 %v867, %v879
  %v936 = vadd.f32 %v868, %v879
  %v937 = vadd.f32 %v869, %v879
  %v938 = vadd.f32 %v870, %v879
  %v939 = vadd.f32 %v871, %v879
  %v940 = vadd.f32 %v872, %v879
  %v941 = vadd.f32 %v873, %v879
  %v942 = vadd.f32 %v874, %v879
  %v943 = vadd.f32 %v875, %v879
  %v944 = vadd.f32 %v876, %v879
  %v945 = vmax.f32 %v881, 0.0
  %v946 = vmax.f32 %v882, 0.0
  %v947 = vmax.f32 %v883, 0.0
  %v948 = vmax.f32 %v884, 0.0
  %v949 = vmax.f32 %v885, 0.0
  %v950 = vmax.f32 %v886, 0.0
  %v951 = vmax.f32 %v887, 0.0
  %v952 = vmax.f32 %v888, 0.0
  %v953 = vmax.f32 %v889, 0.0
  %v954 = vmax.f32 %v890, 0.0
  %v955 = vmax.f32 %v891, 0.0
  %v956 = vmax.f32 %v892, 0.0
  %v957 = vmax.f32 %v893, 0.0
  %v958 = vmax.f32 %v894, 0.0
  %v959 = vmax.f32 %v895, 0.0
  %v960 = vmax.f32 %v896, 0.0
  %v961 = vmax.f32 %v897, 0.0
  %v962 = vmax.f32 %v898, 0.0
  %v963 = vmax.f32 %v899, 0.0
  %v964 = vmax.f32 %v900, 0.0
  %v965 = vmax.f32 %v901, 0.0
  %v966 = vmax.f32 %v902, 0.0
  %v967 = vmax.f32 %v903, 0.0
  %v968 = vmax.f32 %v904, 0.0
  %v969 = vmax.f32 %v905, 0.0
  %v970 = vmax.f32 %v906, 0.0
  %v971 = vmax.f32 %v907, 0.0
  %v972 = vmax.f32 %v908, 0.0
  %v973 = vmax.f32 %v909, 0.0
  %v974 = vmax.f32 %v910, 0.0
  %v975 = vmax.f32 %v911, 0.0
  %v976 = vmax.f32 %v912, 0.0
  %v977 = vmax.f32 %v913, 0.0
  %v978 = vmax.f32 %v914, 0.0
  %v979 = vmax.f32 %v915, 0.0
  %v980 = vmax.f32 %v916, 0.0
  %v981 = vmax.f32 %v917, 0.0
  %v982 = vmax.f32 %v918, 0.0
  %v983 = vmax.f32 %v919, 0.0
  %v984 = vmax.f32 %v920, 0.0
  %v985 = vmax.f32 %v921, 0.0
  %v986 = vmax.f32 %v922, 0.0
  %v987 = vmax.f32 %v923, 0.0
  %v988 = vmax.f32 %v924, 0.0
  %v989 = vmax.f32 %v925, 0.0
  %v990 = vmax.f32 %v926, 0.0
  %v991 = vmax.f32 %v927, 0.0
  %v992 = vmax.f32 %v928, 0.0
  %v993 = vmax.f32 %v929, 0.0
  %v994 = vmax.f32 %v930, 0.0
  %v995 = vmax.f32 %v931, 0.0
  %v996 = vmax.f32 %v932, 0.0
  %v997 = vmax.f32 %v933, 0.0
  %v998 = vmax.f32 %v934, 0.0
  %v999 = vmax.f32 %v935, 0.0
  %v1000 = vmax.f32 %v936, 0.0
  %v1001 = vmax.f32 %v937, 0.0
  %v1002 = vmax.f32 %v938, 0.0
  %v1003 = vmax.f32 %v939, 0.0
  %v1004 = vmax.f32 %v940, 0.0
  %v1005 = vmax.f32 %v941, 0.0
  %v1006 = vmax.f32 %v942, 0.0
  %v1007 = vmax.f32 %v943, 0.0
  %v1008 = vmax.f32 %v944, 0.0
  %v1009 = vmax.f32 %v945, %v961
  %v1010 = vmax.f32 %v946, %v962
  %v1011 = vmax.f32 %v947, %v963
  %v1012 = vmax.f32 %v948, %v964
  %v1013 = vmax.f32 %v949, %v965
  %v1014 = vmax.f32 %v950, %v966
  %v1015 = vmax.f32 %v951, %v967
  %v1016 = vmax.f32 %v952, %v968
  %v1017 = vmax.f32 %v953, %v969
  %v1018 = vmax.f32 %v954, %v970
  %v1019 = vmax.f32 %v955, %v971
  %v1020 = vmax.f32 %v956, %v972
  %v1021 = vmax.f32 %v957, %v973
  %v1022 = vmax.f32 %v958, %v974
  %v1023 = vmax.f32 %v959, %v975
  %v1024 = vmax.f32 %v960, %v976
  %v1025 = vmax.f32 %v977, %v993
  %v1026 = vmax.f32 %v978, %v994
  %v1027 = vmax.f32 %v979, %v995
  %v1028 = vmax.f32 %v980, %v996
  %v1029 = vmax.f32 %v981, %v997
  %v1030 = vmax.f32 %v982, %v998
  %v1031 = vmax.f32 %v983, %v999
  %v1032 = vmax.f32 %v984, %v1000
  %v1033 = vmax.f32 %v985, %v1001
  %v1034 = vmax.f32 %v986, %v1002
  %v1035 = vmax.f32 %v987, %v1003
  %v1036 = vmax.f32 %v988, %v1004
  %v1037 = vmax.f32 %v989, %v1005
  %v1038 = vmax.f32 %v990, %v1006
  %v1039 = vmax.f32 %v991, %v1007
  %v1040 = vmax.f32 %v992, %v1008
  %v1041 = vmax.f32 %v1009, %v1025
  %v1042 = vmax.f32 %v1010, %v1026
  %v1043 = vmax.f32 %v1011, %v1027
  %v1044 = vmax.f32 %v1012, %v1028
  %v1045 = vmax.f32 %v1013, %v1029
  %v1046 = vmax.f32 %v1014, %v1030
  %v1047 = vmax.f32 %v1015, %v1031
  %v1048 = vmax.f32 %v1016, %v1032
  %v1049 = vmax.f32 %v1017, %v1033
  %v1050 = vmax.f32 %v1018, %v1034
  %v1051 = vmax.f32 %v1019, %v1035
  %v1052 = vmax.f32 %v1020, %v1036
  %v1053 = vmax.f32 %v1021, %v1037
  %v1054 = vmax.f32 %v1022, %v1038
  %v1055 = vmax.f32 %v1023, %v1039
  %v1056 = vmax.f32 %v1024, %v1040
  %1057 = vst [vmem:[%s5] sm:$0xff] %v1041
  %1058 = vst [vmem:[%s5 + $0x8] sm:$0xff] %v1042
  %1059 = vst [vmem:[%s5 + $0x10] sm:$0xff] %v1043
  %1060 = vst [vmem:[%s5 + $0x18] sm:$0xff] %v1044
  %1061 = vst [vmem:[%s5 + $0x20] sm:$0xff] %v1045
  %1062 = vst [vmem:[%s5 + $0x28] sm:$0xff] %v1046
  %1063 = vst [vmem:[%s5 + $0x30] sm:$0xff] %v1047
  %1064 = vst [vmem:[%s5 + $0x38] sm:$0xff] %v1048
  %1065 = vst [vmem:[%s5 + $0x40] sm:$0xff] %v1049
  %1066 = vst [vmem:[%s5 + $0x48] sm:$0xff] %v1050
  %1067 = vst [vmem:[%s5 + $0x50] sm:$0xff] %v1051
  %1068 = vst [vmem:[%s5 + $0x58] sm:$0xff] %v1052
  %1069 = vst [vmem:[%s5 + $0x60] sm:$0xff] %v1053
  %1070 = vst [vmem:[%s5 + $0x68] sm:$0xff] %v1054
  %1071 = vst [vmem:[%s5 + $0x70] sm:$0xff] %v1055
  %1072 = vst [vmem:[%s5 + $0x78] sm:$0xff] %v1056
  // Predicated region
  $region22: #{audio_cnn_forward.3} parent=0 // pred_check
    _
  $region23: #{audio_cnn_forward.3} parent=0 // pred_check_branch
    %1074 = sbr.rel (0) target = $region25
  $region24: #{audio_cnn_forward.3} parent=0 // pred_region
    _
  $region25: #{audio_cnn_forward.3} parent=0 // pred_fallthru
    _
  // Predicated region
  $region26: #{audio_cnn_forward.3} parent=0 // pred_check
    _
  $region27: #{audio_cnn_forward.3} parent=0 // pred_check_branch
    %1076 = sbr.rel (0) target = $region29
  $region28: #{audio_cnn_forward.3} parent=0 // pred_region
    _
  $region29: #{audio_cnn_forward.3} parent=0 // pred_fallthru
    _

// kernel: audio_cnn_forward.5
$region0: #{audio_cnn_forward.5}
  #allocation0 [shape = 'u32[]', space=smem, size = 0x4, offset = 0x4, fixed_abs, tag = 'smem constant byte address 0x4 - core index']
  #allocation1 [shape = 'u32[72,128]{1,0:T(1,128)}', space=vmem, size = 0x9000, scoped, tag = 'internal scratch']
  %s0 = inlined_call_operand.vmem [shape: bf16[32,288], index: 0, kind: input, shape index: {}]
  %s1 = inlined_call_operand.vmem [shape: bf16[288,64], index: 1, kind: input, shape index: {}]
  %s2 = inlined_call_operand.vmem [shape: f32[1,64], index: 2, kind: input, shape index: {}]
  %s3 = inlined_call_operand.vmem [shape: f32[1,64], index: 3, kind: input, shape index: {}]
  %s4 = inlined_call_operand.vmem [shape: f32[1,64], index: 4, kind: input, shape index: {}]
  %s5 = inlined_call_operand.vmem [shape: f32[64,128], index: 5, kind: input, shape index: {}]
  %s6 = inlined_call_operand.vmem [shape: f32[1,128], index: 6, kind: input, shape index: {}]
  %s7 = inlined_call_operand.hbm [shape: f32[2,128], index: 7, kind: output, shape index: {}]
  %s8 = sld [smem:[#allocation0]]
  $region38: #{audio_cnn_forward.5} parent=0
    _
  %s10 = ssub.s32 1, %s8
  %s11 = scalar_select 0, %s10, %s8
  $region1: #{audio_cnn_forward.5} parent=0
    #allocation2 [shape = 'u8[1024]{0}', space=vmem, size = 0x400, scoped, tag = 'output window, operand 0, single buffered']
    #allocation3 [shape = 's32[1]{0}', space=sflag, size = 0x4, scoped, tag = 'scoped memory for audio_cnn_forward.5']
    %12 = vsyncpa [#allocation3], 0
    // Predicated region
    $region2: #{audio_cnn_forward.5} parent=1 // pred_check
      _
    $region3: #{audio_cnn_forward.5} parent=1 // pred_check_branch
      %14 = sbr.rel (0) target = $region5
    $region4: #{audio_cnn_forward.5} parent=1 // pred_region
      _
    $region5: #{audio_cnn_forward.5} parent=1 // pred_fallthru
      _
    // Predicated region
    $region6: #{audio_cnn_forward.5} parent=1 // pred_check
      _
    $region7: #{audio_cnn_forward.5} parent=1 // pred_check_branch
      %16 = sbr.rel (0) target = $region9
    $region8: #{audio_cnn_forward.5} parent=1 // pred_region
      _
    $region9: #{audio_cnn_forward.5} parent=1 // pred_fallthru
      _
    // Predicated region
    $region10: #{audio_cnn_forward.5} parent=1 // pred_check
      _
    $region11: #{audio_cnn_forward.5} parent=1 // pred_check_branch
      %18 = sbr.rel (0) target = $region13
    $region12: #{audio_cnn_forward.5} parent=1 // pred_region
      _
    $region13: #{audio_cnn_forward.5} parent=1 // pred_fallthru
      _
    // Predicated region
    $region14: #{audio_cnn_forward.5} parent=1 // pred_check
      _
    $region15: #{audio_cnn_forward.5} parent=1 // pred_check_branch
      %20 = sbr.rel (0) target = $region17
    $region16: #{audio_cnn_forward.5} parent=1 // pred_region
      _
    $region17: #{audio_cnn_forward.5} parent=1 // pred_fallthru
      _
    // Predicated region
    $region18: #{audio_cnn_forward.5} parent=1 // pred_check
      _
    $region19: #{audio_cnn_forward.5} parent=1 // pred_check_branch
      %22 = sbr.rel (0) target = $region21
    $region20: #{audio_cnn_forward.5} parent=1 // pred_region
      _
    $region21: #{audio_cnn_forward.5} parent=1 // pred_fallthru
      _
    // Predicated region
    $region22: #{audio_cnn_forward.5} parent=1 // pred_check
      _
    $region23: #{audio_cnn_forward.5} parent=1 // pred_check_branch
      %24 = sbr.rel (0) target = $region25
    $region24: #{audio_cnn_forward.5} parent=1 // pred_region
      _
    $region25: #{audio_cnn_forward.5} parent=1 // pred_fallthru
      _
    // Predicated region
    $region26: #{audio_cnn_forward.5} parent=1 // pred_check
      _
    $region27: #{audio_cnn_forward.5} parent=1 // pred_check_branch
      %26 = sbr.rel (0) target = $region29
    $region28: #{audio_cnn_forward.5} parent=1 // pred_region
      _
    $region29: #{audio_cnn_forward.5} parent=1 // pred_fallthru
      _
    %v28 = vld [vmem:[%s0] sm:$0xff]
    %v29 = vld [vmem:[%s0 + $0x8] sm:$0xf]
    %v30 = vld [vmem:[%s0 + $0xc] sm:$0xff]
    %v31 = vld [vmem:[%s0 + $0x14] sm:$0xf]
    %v32 = vld [vmem:[%s0 + $0x18] sm:$0xff]
    %v33 = vld [vmem:[%s0 + $0x20] sm:$0xf]
    %v34 = vld [vmem:[%s0 + $0x24] sm:$0xff]
    %v35 = vld [vmem:[%s0 + $0x2c] sm:$0xf]
    %v36 = vld [vmem:[%s1] sm:$0xf]
    %v37 = vld [vmem:[%s1 + $0x4] sm:$0xf]
    %v38 = vld [vmem:[%s1 + $0x8] sm:$0xf]
    %v39 = vld [vmem:[%s1 + $0xc] sm:$0xf]
    %v40 = vld [vmem:[%s1 + $0x10] sm:$0xf]
    %v41 = vld [vmem:[%s1 + $0x14] sm:$0xf]
    %v42 = vld [vmem:[%s1 + $0x18] sm:$0xf]
    %v43 = vld [vmem:[%s1 + $0x1c] sm:$0xf]
    %v44 = vld [vmem:[%s1 + $0x20] sm:$0xf]
    %v45 = vld [vmem:[%s1 + $0x24] sm:$0xf]
    %v46 = vld [vmem:[%s1 + $0x28] sm:$0xf]
    %v47 = vld [vmem:[%s1 + $0x2c] sm:$0xf]
    %v48 = vld [vmem:[%s1 + $0x30] sm:$0xf]
    %v49 = vld [vmem:[%s1 + $0x34] sm:$0xf]
    %v50 = vld [vmem:[%s1 + $0x38] sm:$0xf]
    %v51 = vld [vmem:[%s1 + $0x3c] sm:$0xf]
    %v52 = vld [vmem:[%s1 + $0x40] sm:$0xf]
    %v53 = vld [vmem:[%s1 + $0x44] sm:$0xf]
    %v54 = vld [vmem:[%s1 + $0x48] sm:$0xf]
    %v55 = vld [vmem:[%s1 + $0x4c] sm:$0xf]
    %v56 = vld [vmem:[%s1 + $0x50] sm:$0xf]
    %v57 = vld [vmem:[%s1 + $0x54] sm:$0xf]
    %v58 = vld [vmem:[%s1 + $0x58] sm:$0xf]
    %v59 = vld [vmem:[%s1 + $0x5c] sm:$0xf]
    %v60 = vld [vmem:[%s1 + $0x60] sm:$0xf]
    %v61 = vld [vmem:[%s1 + $0x64] sm:$0xf]
    %v62 = vld [vmem:[%s1 + $0x68] sm:$0xf]
    %v63 = vld [vmem:[%s1 + $0x6c] sm:$0xf]
    %v64 = vld [vmem:[%s1 + $0x70] sm:$0xf]
    %v65 = vld [vmem:[%s1 + $0x74] sm:$0xf]
    %v66 = vld [vmem:[%s1 + $0x78] sm:$0xf]
    %v67 = vld [vmem:[%s1 + $0x7c] sm:$0xf]
    %v68 = vld [vmem:[%s1 + $0x80] sm:$0xf]
    %v69 = vld [vmem:[%s1 + $0x84] sm:$0xf]
    %v70 = vld [vmem:[%s1 + $0x88] sm:$0xf]
    %v71 = vld [vmem:[%s1 + $0x8c] sm:$0xf]
    %v72 = vld [vmem:[%s2] sm:$0x1]
    %v74 = vperm.slane %v72, 0
    %v84 = vunpack.c.l.b16 %v28
    %v85 = vunpack.c.h.b16 %v28
    %v86 = vunpack.c.l.b16 %v29
    %v87 = vunpack.c.l.b16 %v30
    %v88 = vunpack.c.h.b16 %v30
    %v89 = vunpack.c.l.b16 %v31
    %v90 = vunpack.c.l.b16 %v32
    %v91 = vunpack.c.h.b16 %v32
    %v92 = vunpack.c.l.b16 %v33
    %v93 = vunpack.c.l.b16 %v34
    %v94 = vunpack.c.h.b16 %v34
    %v95 = vunpack.c.l.b16 %v35
    %v96 = vpack.c.b16 %v87, %v84
    %v97 = vpack.c.b16 %v88, %v85
    %v98 = vpack.c.b16 %v89, %v86
    %v99 = vpack.c.b16 %v93, %v90
    %v100 = vpack.c.b16 %v94, %v91
    %v101 = vpack.c.b16 %v95, %v92
    %v142 = vunpack.c.l.b16 %v36
    %v143 = vunpack.c.l.b16 %v37
    %v144 = vunpack.c.l.b16 %v38
    %v145 = vunpack.c.l.b16 %v39
    %v146 = vunpack.c.l.b16 %v40
    %v147 = vunpack.c.l.b16 %v41
    %v148 = vunpack.c.l.b16 %v42
    %v149 = vunpack.c.l.b16 %v43
    %v150 = vunpack.c.l.b16 %v44
    %v151 = vunpack.c.l.b16 %v45
    %v152 = vunpack.c.l.b16 %v46
    %v153 = vunpack.c.l.b16 %v47
    %v154 = vunpack.c.l.b16 %v48
    %v155 = vunpack.c.l.b16 %v49
    %v156 = vunpack.c.l.b16 %v50
    %v157 = vunpack.c.l.b16 %v51
    %v158 = vunpack.c.l.b16 %v52
    %v159 = vunpack.c.l.b16 %v53
    %v160 = vunpack.c.l.b16 %v54
    %v161 = vunpack.c.l.b16 %v55
    %v162 = vunpack.c.l.b16 %v56
    %v163 = vunpack.c.l.b16 %v57
    %v164 = vunpack.c.l.b16 %v58
    %v165 = vunpack.c.l.b16 %v59
    %v166 = vunpack.c.l.b16 %v60
    %v167 = vunpack.c.l.b16 %v61
    %v168 = vunpack.c.l.b16 %v62
    %v169 = vunpack.c.l.b16 %v63
    %v170 = vunpack.c.l.b16 %v64
    %v171 = vunpack.c.l.b16 %v65
    %v172 = vunpack.c.l.b16 %v66
    %v173 = vunpack.c.l.b16 %v67
    %v174 = vunpack.c.l.b16 %v68
    %v175 = vunpack.c.l.b16 %v69
    %v176 = vunpack.c.l.b16 %v70
    %v177 = vunpack.c.l.b16 %v71
    %v178 = vpack.c.b16 %v143, %v142
    %v179 = vpack.c.b16 %v145, %v144
    %v180 = vpack.c.b16 %v147, %v146
    %v181 = vpack.c.b16 %v149, %v148
    %v182 = vpack.c.b16 %v151, %v150
    %v183 = vpack.c.b16 %v153, %v152
    %v184 = vpack.c.b16 %v155, %v154
    %v185 = vpack.c.b16 %v157, %v156
    %v186 = vpack.c.b16 %v159, %v158
    %v187 = vpack.c.b16 %v161, %v160
    %v188 = vpack.c.b16 %v163, %v162
    %v189 = vpack.c.b16 %v165, %v164
    %v190 = vpack.c.b16 %v167, %v166
    %v191 = vpack.c.b16 %v169, %v168
    %v192 = vpack.c.b16 %v171, %v170
    %v193 = vpack.c.b16 %v173, %v172
    %v194 = vpack.c.b16 %v175, %v174
    %v195 = vpack.c.b16 %v177, %v176
    %vm214 = vcmask 261120
    %v216 = vsel %vm214, %v98, 0
    %v219 = vsel %vm214, %v101, 0
    %221 = vmatpush.bf16.msra.mxu0 %v185
    %222 = vmatpush.bf16.msra.mxu0 %v184
    %223 = vmatpush.bf16.msra.mxu0 %v183
    %224 = vmatpush.bf16.msra.mxu0 %v182
    %225 = vmatpush.bf16.msra.mxu0 %v181
    %226 = vmatpush.bf16.msra.mxu0 %v180
    %227 = vmatpush.bf16.msra.mxu0 %v179
    %228 = vmatpush.bf16.msra.mxu0 %v178
    %229 = vmatmul.bf16.gmra.mxu0 %v96
    %v230 = vpop.f32.mrf.mxu0
    %v231 = vadd.f32 %v74, %v230
    %v232 = vpop.f32.mrf.mxu0
    %v233 = vadd.f32 %v74, %v232
    %234 = vmatmul.bf16.gmra.mxu0 %v99
    %v235 = vpop.f32.mrf.mxu0
    %v236 = vadd.f32 %v74, %v235
    %v237 = vpop.f32.mrf.mxu0
    %v238 = vadd.f32 %v74, %v237
    %239 = vdwg.mxu0
    %240 = vmatpush.bf16.msra.mxu0 %v193
    %241 = vmatpush.bf16.msra.mxu0 %v192
    %242 = vmatpush.bf16.msra.mxu0 %v191
    %243 = vmatpush.bf16.msra.mxu0 %v190
    %244 = vmatpush.bf16.msra.mxu0 %v189
    %245 = vmatpush.bf16.msra.mxu0 %v188
    %246 = vmatpush.bf16.msra.mxu0 %v187
    %247 = vmatpush.bf16.msra.mxu0 %v186
    %248 = vmatmul.bf16.gmra.mxu0 %v97
    %v249 = vpop.f32.mrf.mxu0
    %v250 = vadd.f32 %v231, %v249
    %v251 = vpop.f32.mrf.mxu0
    %v252 = vadd.f32 %v233, %v251
    %253 = vmatmul.bf16.gmra.mxu0 %v100
    %v254 = vpop.f32.mrf.mxu0
    %v255 = vadd.f32 %v236, %v254
    %v256 = vpop.f32.mrf.mxu0
    %v257 = vadd.f32 %v238, %v256
    %258 = vdwg.mxu0
    %259 = vmatpush.bf16.msra.mxu0 0
    %260 = vmatpush.bf16.msra.mxu0 0
    %261 = vmatpush.bf16.msra.mxu0 0
    %262 = vmatpush.bf16.msra.mxu0 0
    %263 = vmatpush.bf16.msra.mxu0 0
    %264 = vmatpush.bf16.msra.mxu0 0
    %265 = vmatpush.bf16.msra.mxu0 %v195
    %266 = vmatpush.bf16.msra.mxu0 %v194
    %267 = vmatmul.bf16.gmra.mxu0 %v216
    %v268 = vpop.f32.mrf.mxu0
    %v269 = vadd.f32 %v250, %v268
    %v270 = vpop.f32.mrf.mxu0
    %v271 = vadd.f32 %v252, %v270
    %272 = vmatmul.bf16.gmra.mxu0 %v219
    %v273 = vpop.f32.mrf.mxu0
    %v274 = vadd.f32 %v255, %v273
    %v275 = vpop.f32.mrf.mxu0
    %v276 = vadd.f32 %v257, %v275
    %277 = vdwg.mxu0
    %vm278 = vcmask 523264
    %v279 = vsel %vm278, %v269, 0.0
    %v280 = vsel %vm278, %v271, 0.0
    %v281 = vadd.f32 %v279, %v280
    %v282 = vsel %vm278, %v274, 0.0
    %v283 = vadd.f32 %v281, %v282
    %v284 = vsel %vm278, %v276, 0.0
    %v285 = vadd.f32 %v283, %v284
    %v286 = vrot.slane %v285, 4
    %v287 = vadd.f32 %v285, %v286
    %v288 = vrot.slane %v287, 2
    %v289 = vadd.f32 %v287, %v288
    %v290 = vrot.slane %v289, 1
    %v291 = vadd.f32 %v289, %v290
    %v292 = vmul.f32 %v291, 0.03125
    %v293 = vsub.f32 %v269, %v292
    %v294 = vsub.f32 %v271, %v292
    %v295 = vsub.f32 %v274, %v292
    %v296 = vsub.f32 %v276, %v292
    %v297 = vmul.f32 %v293, %v293
    %v298 = vmul.f32 %v294, %v294
    %v299 = vmul.f32 %v295, %v295
    %v300 = vmul.f32 %v296, %v296
    %v301 = vsel %vm278, %v297, 0.0
    %v302 = vsel %vm278, %v298, 0.0
    %v303 = vadd.f32 %v301, %v302
    %v304 = vsel %vm278, %v299, 0.0
    %v305 = vadd.f32 %v303, %v304
    %v306 = vsel %vm278, %v300, 0.0
    %v307 = vadd.f32 %v305, %v306
    %v308 = vrot.slane %v307, 4
    %v309 = vadd.f32 %v307, %v308
    %v310 = vrot.slane %v309, 2
    %v311 = vadd.f32 %v309, %v310
    %v312 = vrot.slane %v311, 1
    %v313 = vadd.f32 %v311, %v312
    %v314 = vmul.f32 %v313, 0.03125
    %v315 = vld [vmem:[%s3] sm:$0x1]
    %v316 = vadd.f32 %v314, 1e-05
    %v317 = vrsqrt.pop %v316
    %v318 = vmul.f32 %v317, %v316
    %v319 = vmul.f32 %v318, %v317
    %v320 = vmul.f32 0.5, %v319
    %v321 = vsub.f32 1.5, %v320
    %v322 = vmul.f32 %v317, %v321
    %vm323 = vweird.f32 %v316
    %vm324 = vweird.f32 %v317
    %vm325 = vmor %vm323, %vm324
    %v326 = vsel %vm325, %v317, %v322
    %v327 = vmul.f32 %v315, %v326
    %v329 = vperm.slane %v327, 0
    %v331 = vmul.f32 %v293, %v329
    %v332 = vmul.f32 %v294, %v329
    %v333 = vmul.f32 %v295, %v329
    %v334 = vmul.f32 %v296, %v329
    %v335 = vld [vmem:[%s4] sm:$0x1]
    %v337 = vperm.slane %v335, 0
    %v339 = vadd.f32 %v331, %v337
    %v340 = vadd.f32 %v332, %v337
    %v341 = vadd.f32 %v333, %v337
    %v342 = vadd.f32 %v334, %v337
    %v343 = vmax.f32 %v339, 0.0
    %v344 = vmax.f32 %v340, 0.0
    %v345 = vmax.f32 %v341, 0.0
    %v346 = vmax.f32 %v342, 0.0
    %v347 = vsel %vm278, %v343, 0.0
    %v348 = vsel %vm278, %v344, 0.0
    %v349 = vadd.f32 %v347, %v348
    %v350 = vrot.slane %v349, 4
    %v351 = vadd.f32 %v349, %v350
    %v352 = vrot.slane %v351, 2
    %v353 = vadd.f32 %v351, %v352
    %v354 = vrot.slane %v353, 1
    %v355 = vadd.f32 %v353, %v354
    %v356 = vsel %vm278, %v345, 0.0
    %v357 = vsel %vm278, %v346, 0.0
    %v358 = vadd.f32 %v356, %v357
    %v359 = vrot.slane %v358, 4
    %v360 = vadd.f32 %v358, %v359
    %v361 = vrot.slane %v360, 2
    %v362 = vadd.f32 %v360, %v361
    %v363 = vrot.slane %v362, 1
    %v364 = vadd.f32 %v362, %v363
    %v365 = vrcp.pop 16.0
    %v366 = vmul.f32 16.0, %v365
    %v367 = vsub.f32 1.0, %v366
    %v368 = vmul.f32 %v365, %v367
    %v369 = vadd.f32 %v365, %v368
    %vm370 = vweird.f32 %v365
    %v371 = vsel %vm370, %v365, %v369
    %v372 = vmul.f32 %v355, %v371
    %v373 = vmul.f32 %v364, %v371
    %v374 = vld [vmem:[%s5] sm:$0xff]
    %v375 = vld [vmem:[%s5 + $0x8] sm:$0xff]
    %v376 = vld [vmem:[%s5 + $0x10] sm:$0xff]
    %v377 = vld [vmem:[%s5 + $0x18] sm:$0xff]
    %v378 = vld [vmem:[%s5 + $0x20] sm:$0xff]
    %v379 = vld [vmem:[%s5 + $0x28] sm:$0xff]
    %v380 = vld [vmem:[%s5 + $0x30] sm:$0xff]
    %v381 = vld [vmem:[%s5 + $0x38] sm:$0xff]
    %v382 = vld [vmem:[%s6] sm:$0x1]
    %v384 = vperm.slane %v382, 0
    %vm388 = vcmask 1041409
    %v389 = vsel %vm388, %v373, %v372
    %v390 = vsel %vm278, %v389, 0
    %392 = vmatpush.msra.mxu0 0.0
    %393 = vmatpush.msra.mxu0 0.0
    %394 = vmatpush.msra.mxu0 0.0
    %395 = vmatpush.msra.mxu0 0.0
    %396 = vmatpush.msra.mxu0 0.0
    %397 = vmatpush.msra.mxu0 0.0
    %398 = vmatpush.msra.mxu0 0.0
    %399 = vmatpush.msra.mxu0 0.0
    %400 = vmatpush.msra.mxu0 %v381
    %401 = vmatpush.msra.mxu0 %v380
    %402 = vmatpush.msra.mxu0 %v379
    %403 = vmatpush.msra.mxu0 %v378
    %404 = vmatpush.msra.mxu0 %v377
    %405 = vmatpush.msra.mxu0 %v376
    %406 = vmatpush.msra.mxu0 %v375
    %407 = vmatpush.msra.mxu0 %v374
    %408 = vmatmul.f32.gmra.mxu0 %v390
    %v409 = vpop.f32.mrf.mxu0
    %v410 = vadd.f32 %v384, %v409
    %411 = vdwg.mxu0
    %412 = vst [vmem:[#allocation2] sm:$0x3] %v410
    // Predicated region
    $region30: #{audio_cnn_forward.5} parent=1 // pred_check
      _
    $region31: #{audio_cnn_forward.5} parent=1 // pred_check_branch
      %414 = sbr.rel (0) target = $region33
    $region32: #{audio_cnn_forward.5} parent=1 // pred_region
      %416 = vsyncadd [#allocation3], 0
      %s418 = sshll.u32 [#allocation2], 4
      %s419 = int_to_ptr.vmem [resolvable:$true] %s418
      %s420 = sshll.u32 %s7, 4
      %s421 = int_to_ptr.hbm [resolvable:$true] %s420
      %423 = dma.vmem_to_hbm [thread:$0]  %s419, 32, %s421, [#allocation3]
    $region33: #{audio_cnn_forward.5} parent=1 // pred_fallthru
      _
    // Predicated region
    $region34: #{audio_cnn_forward.5} parent=1 // pred_check
      _
    $region35: #{audio_cnn_forward.5} parent=1 // pred_check_branch
      %425 = sbr.rel (0) target = $region37
    $region36: #{audio_cnn_forward.5} parent=1 // pred_region
      %427 = dma.done [#allocation3], 32
    $region37: #{audio_cnn_forward.5} parent=1 // pred_fallthru
      _
    %428 = vsyncpa [#allocation3], 1

</llo_original>
